<compile_context>
chip_gen: v7x
topology: tpu7x:2x2x1
jax: 0.10.0
libtpu: 0.0.40
codegen_flags: <defaults>
</compile_context>

<pallas_src>
import functools
import math

import jax
import jax.numpy as jnp
import numpy as np
from jax.experimental import pallas as pl
from jax.experimental.pallas import tpu as pltpu


def _round_up(x, m):
    return (x + m - 1) // m * m


@functools.lru_cache(maxsize=None)
def _vmem_limit_bytes():
    """Generation-aware scoped-VMEM limit (~3/4 of physical, clamped 32..100 MiB)."""
    try:
        cap = int(pltpu.get_tpu_info().vmem_capacity_bytes)
    except Exception:
        cap = 64 * 1024 * 1024          # conservative (v7x per-core size)
    return int(max(32 * 1024 * 1024, min(100 * 1024 * 1024, cap * 3 // 4)))


def _apply_act(y, activation):
    if activation == "leaky_relu":
        return jnp.where(y >= 0, y, 0.2 * y)     # nvas3d uses LeakyReLU(0.2)
    if activation == "relu":
        return jnp.maximum(y, 0.0)
    if activation == "sigmoid":
        return jax.nn.sigmoid(y)
    if activation == "tanh":
        return jnp.tanh(y)
    return y


# ---------------------------------------------------------------------------
# Fused stride-1 convolution kernel.
#   x_ref     : (Hin, Win, Cin)   whole pre-padded input, VMEM resident
#   w_ref     : (KH*KW*Cin, Cout) scale-folded bf16 weights, VMEM resident
#   shift_ref : (1, Cout)         bias / folded-BN shift
#   o_ref     : (toh, OW, Cout)   one output row band
# Patch windows are built in-kernel (no HBM im2col); KH*KW per-tap matmuls
# (K = Cin each) accumulate in f32; affine + activation fused in the epilogue.
# ---------------------------------------------------------------------------
def _conv_s1_kernel(x_ref, w_ref, shift_ref, o_ref, *, kh_kw, toh, ow, activation):
    KH, KW = kh_kw
    cin = x_ref.shape[-1]
    cout = o_ref.shape[-1]
    row0 = pl.multiple_of(pl.program_id(1) * toh, toh)
    acc = None
    for kh in range(KH):
        # One dynamic row-band load per kernel row; the small static column
        # shifts for the KW taps are done on the VMEM-resident value.
        rows = x_ref[pl.ds(row0 + kh, toh)]                    # (toh, Win, cin)
        for kw in range(KW):
            win = rows[:, kw:kw + ow, :].reshape(toh * ow, cin)
            wk = w_ref[(kh * KW + kw) * cin:(kh * KW + kw + 1) * cin, :]
            part = jnp.dot(win, wk, preferred_element_type=jnp.float32)
            acc = part if acc is None else acc + part
    y = _apply_act(acc + shift_ref[...], activation)
    o_ref[...] = y.reshape(toh, ow, cout).astype(o_ref.dtype)


def _pick_toh(OH, OW, Cin, Cout):
    """Output rows (in the H dim) per grid step.

    Sized so the in-kernel live set (f32 accumulator, double-buffered output
    block, per-tap row-band slice), estimated with (8,128) lane padding, stays
    ~<= 6 MiB, and so that there are >= 2 row bands whenever possible (work for
    both v7x TensorCores)."""
    cin_p = _round_up(max(Cin, 1), 128)
    cout_p = _round_up(max(Cout, 1), 128)
    per_row = 4 * cout_p + 4 * cout_p + 4 * cin_p
    rows = max(256, min(8192, (6 * 1024 * 1024) // per_row))
    toh = max(1, min(OH, rows // max(OW, 1)))
    toh = 1 << (int(toh).bit_length() - 1)          # power of two
    while OH % toh:
        toh //= 2
    if toh >= OH and OH > 1:                         # keep >= 2 bands (megacore)
        toh = OH // 2
        while toh > 1 and OH % toh:
            toh //= 2
    return max(toh, 1)


def _conv_s1(x, w, shift, activation, out_dtype):
    """Valid (pre-padded) stride-1 cross-correlation.  x: (N, Hin, Win, Cin)
    NHWC; w: (KH, KW, Cin, Cout) (scale already folded in); out NHWC."""
    N, Hin, Win, Cin = x.shape
    KH, KW, Cin2, Cout = w.shape
    assert Cin == Cin2, (Cin, Cin2)
    OH, OW = Hin - KH + 1, Win - KW + 1
    toh = _pick_toh(OH, OW, Cin, Cout)
    nb = OH // toh

    wmat = w.reshape(KH * KW * Cin, Cout).astype(jnp.bfloat16)
    shift2 = shift.reshape(1, Cout).astype(jnp.float32)
    kern = functools.partial(_conv_s1_kernel, kh_kw=(KH, KW), toh=toh, ow=OW,
                             activation=activation)
    return pl.pallas_call(
        kern,
        out_shape=jax.ShapeDtypeStruct((N, OH, OW, Cout), out_dtype),
        grid_spec=pltpu.PrefetchScalarGridSpec(
            num_scalar_prefetch=0,
            grid=(N, nb),
            in_specs=[
                # Whole padded input resident in VMEM; block index is constant
                # across the band axis so it is DMA'd from HBM only once.
                pl.BlockSpec((None, Hin, Win, Cin), lambda b, i: (b, 0, 0, 0)),
                pl.BlockSpec((KH * KW * Cin, Cout), lambda b, i: (0, 0)),
                pl.BlockSpec((1, Cout), lambda b, i: (0, 0)),
            ],
            out_specs=pl.BlockSpec((None, toh, OW, Cout), lambda b, i: (b, i, 0, 0)),
        ),
        compiler_params=pltpu.CompilerParams(
            dimension_semantics=("parallel", "parallel"),
            vmem_limit_bytes=_vmem_limit_bytes()),
    )(x.astype(jnp.bfloat16), wmat, shift2)


# ---------------------------------------------------------------------------
# Tiny single-block matmul kernel (detector's 2x2 conv on a 2x2 map and the
# final Linear(32,1): M == 1, so we pad M to 8 instead of using the conv path).
# ---------------------------------------------------------------------------
def _small_mm_kernel(x_ref, w_ref, shift_ref, o_ref, *, activation):
    y = jnp.dot(x_ref[...], w_ref[...], preferred_element_type=jnp.float32)
    y = _apply_act(y + shift_ref[...], activation)
    o_ref[...] = y.astype(o_ref.dtype)


def small_matmul_pallas(x, w, shift, activation="none", out_dtype=jnp.float32):
    M, K = x.shape
    K2, Nc = w.shape
    assert K == K2
    Mp = max(8, _round_up(M, 8))
    xp = jnp.pad(x.astype(jnp.bfloat16), ((0, Mp - M), (0, 0)))
    out = pl.pallas_call(
        functools.partial(_small_mm_kernel, activation=activation),
        out_shape=jax.ShapeDtypeStruct((Mp, Nc), out_dtype),
        grid_spec=pltpu.PrefetchScalarGridSpec(
            num_scalar_prefetch=0,
            grid=(1,),
            in_specs=[pl.BlockSpec((Mp, K), lambda i: (0, 0)),
                      pl.BlockSpec((K, Nc), lambda i: (0, 0)),
                      pl.BlockSpec((1, Nc), lambda i: (0, 0))],
            out_specs=pl.BlockSpec((Mp, Nc), lambda i: (0, 0)),
        ),
        compiler_params=pltpu.CompilerParams(
            dimension_semantics=("arbitrary",),
            vmem_limit_bytes=_vmem_limit_bytes()),
    )(xp, w.astype(jnp.bfloat16), shift.reshape(1, Nc).astype(jnp.float32))
    return out[:M]


# ---------------------------------------------------------------------------
# Layer wrappers (padding / space-to-depth / pixel-shuffle glue in XLA,
# everything compute-bearing in the fused Pallas kernel).
# ---------------------------------------------------------------------------
def conv3x3_pallas(x, unit, activation, out_dtype=jnp.bfloat16):
    """PyTorch Conv2d(k=3, s=1, p=1) (+ folded BN + activation)."""
    xpad = jnp.pad(x.astype(jnp.bfloat16), ((0, 0), (1, 1), (1, 1), (0, 0)))
    return _conv_s1(xpad, unit["w"], unit["shift"], activation, out_dtype)


def conv_s2d_pallas(x, unit, activation, out_dtype=jnp.bfloat16):
    """PyTorch Conv2d(k=4, s=2, p=1) via space-to-depth -> stride-1 2x2 conv."""
    N, H, W, C = x.shape
    xp = jnp.pad(x.astype(jnp.bfloat16), ((0, 0), (1, 1), (1, 1), (0, 0)))
    xs = xp.reshape(N, (H + 2) // 2, 2, (W + 2) // 2, 2, C)
    xs = xs.transpose(0, 1, 3, 2, 4, 5).reshape(N, (H + 2) // 2, (W + 2) // 2, 4 * C)
    return _conv_s1(xs, unit["w"], unit["shift"], activation, out_dtype)


def conv_transpose_pallas(x, unit, activation, out_dtype=jnp.bfloat16):
    """PyTorch ConvTranspose2d(k=4, s=2, p=1) (+ folded BN + activation) as ONE
    fused stride-1 3x3 conv with 4x output channels + XLA pixel shuffle."""
    N, H, W, _ = x.shape
    cout = unit["w"].shape[-1] // 4
    xpad = jnp.pad(x.astype(jnp.bfloat16), ((0, 0), (1, 1), (1, 1), (0, 0)))
    y4 = _conv_s1(xpad, unit["w"], unit["shift"], activation, out_dtype)
    y4 = y4.reshape(N, H, W, 2, 2, cout)                       # (pi, pj, co)
    return y4.transpose(0, 1, 3, 2, 4, 5).reshape(N, 2 * H, 2 * W, cout)


def maxpool_nhwc(x, ph, pw):
    # Pure mem-bound window max: left to XLA (single fused pass).
    N, H, W, C = x.shape
    return x.reshape(N, H // ph, ph, W // pw, pw, C).max(axis=(2, 4))


def upsample_nearest(x, sh, sw):
    if sh > 1:
        x = jnp.repeat(x, sh, axis=1)
    if sw > 1:
        x = jnp.repeat(x, sw, axis=2)
    return x


# ---------------------------------------------------------------------------
# Weight rewrites (done once at parameter-build time).
# ---------------------------------------------------------------------------
def _s2d_weights(w4):
    """(4, 4, Cin, Cout) -> (2, 2, 4*Cin, Cout) weights for the space-to-depth
    formulation of Conv2d(k=4, s=2, p=1) (channel order (r, s, ci))."""
    _, _, Cin, Cout = w4.shape
    w = w4.reshape(2, 2, 2, 2, Cin, Cout)      # (a, r, b, s, Cin, Cout)
    w = w.transpose(0, 2, 1, 3, 4, 5)          # (a, b, r, s, Cin, Cout)
    return w.reshape(2, 2, 4 * Cin, Cout)


def _convT_eff_weights(w_t):
    """ConvTranspose2d(k=4, s=2, p=1) == stride-1 3x3 pad-1 conv with 4x the
    output channels (one group per output parity (pi, pj)) + pixel shuffle.
    w_t: (Cin, Cout, 4, 4) (PyTorch layout) -> (3, 3, Cin, 4*Cout)."""
    Cin, Cout = w_t.shape[0], w_t.shape[1]
    w_eff = jnp.zeros((3, 3, Cin, 4, Cout), w_t.dtype)
    for u in range(3):
        for pi in range(2):
            kh = pi + 3 - 2 * u
            if not 0 <= kh <= 3:
                continue
            for v in range(3):
                for pj in range(2):
                    kw = pj + 3 - 2 * v
                    if not 0 <= kw <= 3:
                        continue
                    w_eff = w_eff.at[u, v, :, pi * 2 + pj, :].set(w_t[:, :, kh, kw])
    return w_eff.reshape(3, 3, Cin, 4 * Cout)


# ---------------------------------------------------------------------------
# Parameter construction (deterministic; eval-mode BatchNorm folded; the
# BN/bias scale is folded straight into the weights -> epilogue = shift only).
# ---------------------------------------------------------------------------
_BN_EPS = 1e-5


def _fold_bn_affine(bias, gamma, beta, mean, var, eps=_BN_EPS):
    scale = gamma / jnp.sqrt(var + eps)
    shift = beta + (bias - mean) * scale
    return scale, shift


def _affine(key_b, cout, use_bn):
    b = jax.random.normal(key_b, (cout,), jnp.float32) * 0.01
    if use_bn:
        # TODO(synk): eval-mode BatchNorm only (running stats folded).
        gamma = jnp.ones((cout,), jnp.float32)
        beta = jnp.zeros((cout,), jnp.float32)
        mean = jnp.zeros((cout,), jnp.float32)
        var = jnp.ones((cout,), jnp.float32)
        return _fold_bn_affine(b, gamma, beta, mean, var)
    return jnp.ones((cout,), jnp.float32), b


def _conv_unit(key, k, cin, cout, use_bn):
    k1, k2 = jax.random.split(key)
    w = jax.random.normal(k1, (k, k, cin, cout), jnp.float32) * (0.1 / math.sqrt(k * k * cin))
    scale, shift = _affine(k2, cout, use_bn)
    return {"w": w * scale, "shift": shift}


def _conv_s2_unit(key, cin, cout, use_bn):
    u = _conv_unit(key, 4, cin, cout, use_bn)
    return {"w": _s2d_weights(u["w"]), "shift": u["shift"]}


def _convT_unit(key, cin, cout, use_bn):
    k1, k2 = jax.random.split(key)
    w_t = jax.random.normal(k1, (cin, cout, 4, 4), jnp.float32) * (0.1 / math.sqrt(16 * cin))
    scale, shift = _affine(k2, cout, use_bn)
    w_t = w_t * scale[None, :, None, None]
    return {"w": _convT_eff_weights(w_t), "shift": jnp.tile(shift, 4)}


def init_audionet_params(key, ngf=16, input_nc=2, output_nc=2,
                         audioVisual_feature_dim=None, use_norm=True):
    if audioVisual_feature_dim is None:
        audioVisual_feature_dim = ngf * 8
    fdim = audioVisual_feature_dim
    keys = iter(jax.random.split(key, 64))
    cu = lambda cin, cout, k, bn: _conv_unit(next(keys), k, cin, cout, bn)

    p = {}
    p["conv1"] = _conv_s2_unit(next(keys), input_nc, ngf, False)
    p["conv2"] = _conv_s2_unit(next(keys), ngf, ngf * 2, use_norm)
    p["conv3"] = [cu(ngf * 2, ngf * 4, 3, use_norm), cu(ngf * 4, ngf * 4, 3, use_norm)]
    p["conv4"] = [cu(ngf * 4, ngf * 8, 3, use_norm), cu(ngf * 8, ngf * 8, 3, use_norm)]
    for name in ("conv5", "conv6", "conv7", "conv8"):
        p[name] = [cu(ngf * 8, ngf * 8, 3, use_norm), cu(ngf * 8, ngf * 8, 3, use_norm)]
    p["up1"] = cu(fdim, ngf * 8, 3, use_norm)
    p["up2"] = cu(ngf * 16, ngf * 8, 3, use_norm)
    p["up3"] = cu(ngf * 16, ngf * 8, 3, use_norm)
    p["up4"] = cu(ngf * 16, ngf * 8, 3, use_norm)
    p["up5"] = cu(ngf * 16, ngf * 4, 3, use_norm)
    p["up6"] = cu(ngf * 8, ngf * 2, 3, use_norm)
    p["up7"] = _convT_unit(next(keys), ngf * 4, ngf, use_norm)
    p["up8"] = _convT_unit(next(keys), ngf * 2, output_nc, False)     # outermost
    p["det_conv1"] = cu(fdim, 64, 3, False)
    p["det_conv2"] = cu(64, 32, 2, False)
    kw_, kb_ = jax.random.split(next(keys))
    p["det_lin_w"] = jax.random.normal(kw_, (32, 1), jnp.float32) * 0.1
    p["det_lin_b"] = jax.random.normal(kb_, (1,), jnp.float32) * 0.01
    return p


# ---------------------------------------------------------------------------
# Forward pass (activations stay bf16 between layers; outputs cast to f32).
# ---------------------------------------------------------------------------
def _apply_block(x, units):
    for u in units:
        x = conv3x3_pallas(x, u, "leaky_relu")
    return x


def audionet_forward(params, audio_mix_stft, visual_feat=None, disable_detection=False):
    # audio_mix_stft: NCHW (PyTorch convention) -> NHWC internally.
    xh = jnp.transpose(audio_mix_stft, (0, 2, 3, 1)).astype(jnp.float32)

    c1 = conv_s2d_pallas(xh, params["conv1"], "leaky_relu")
    c2 = conv_s2d_pallas(c1, params["conv2"], "leaky_relu")
    c3 = maxpool_nhwc(_apply_block(c2, params["conv3"]), 2, 2)
    c4 = maxpool_nhwc(_apply_block(c3, params["conv4"]), 2, 2)
    c5 = maxpool_nhwc(_apply_block(c4, params["conv5"]), 2, 2)
    c6 = maxpool_nhwc(_apply_block(c5, params["conv6"]), 2, 2)
    c7 = maxpool_nhwc(_apply_block(c6, params["conv7"]), 2, 1)
    c8 = maxpool_nhwc(_apply_block(c7, params["conv8"]), 2, 1)

    av = c8   # use_visual=False

    if not disable_detection:
        d = conv3x3_pallas(av, params["det_conv1"], "relu")
        d = maxpool_nhwc(d, 2, 2)                                 # (N, 2, 2, 64)
        # Conv2d(64, 32, k=2, s=1): a single output pixel -> tiny matmul path.
        cols = [d[:, kh:kh + 1, kw:kw + 1, :] for kh in range(2) for kw in range(2)]
        patches = jnp.concatenate(cols, axis=-1).reshape(d.shape[0], 4 * 64)
        d2 = small_matmul_pallas(patches, params["det_conv2"]["w"].reshape(4 * 64, 32),
                                 params["det_conv2"]["shift"], "relu", jnp.float32)
        source_detection = small_matmul_pallas(d2, params["det_lin_w"],
                                               params["det_lin_b"], "none", jnp.float32)
    else:
        source_detection = jnp.array([[0.0]], jnp.float32)

    u1 = conv3x3_pallas(upsample_nearest(av, 2, 1), params["up1"], "relu")
    u2 = conv3x3_pallas(upsample_nearest(jnp.concatenate([u1, c7], -1), 2, 1),
                        params["up2"], "relu")
    u3 = conv3x3_pallas(upsample_nearest(jnp.concatenate([u2, c6], -1), 2, 2),
                        params["up3"], "relu")
    u4 = conv3x3_pallas(upsample_nearest(jnp.concatenate([u3, c5], -1), 2, 2),
                        params["up4"], "relu")
    u5 = conv3x3_pallas(upsample_nearest(jnp.concatenate([u4, c4], -1), 2, 2),
                        params["up5"], "relu")
    u6 = conv3x3_pallas(upsample_nearest(jnp.concatenate([u5, c3], -1), 2, 2),
                        params["up6"], "relu")
    u7 = conv_transpose_pallas(jnp.concatenate([u6, c2], -1), params["up7"], "relu")
    pred = conv_transpose_pallas(jnp.concatenate([u7, c1], -1), params["up8"],
                                 "none", out_dtype=jnp.float32)   # outermost: no act

    pred_stft = jnp.transpose(pred, (0, 3, 1, 2)).astype(jnp.float32)
    audio_conv8feature = jnp.transpose(c8, (0, 3, 1, 2)).astype(jnp.float32)
    return pred_stft, audio_conv8feature, source_detection


# ---------------------------------------------------------------------------
# Small numerical self-tests (structural correctness of the three conv
# rewrites; both sides use the same bf16-rounded inputs so true error ~1e-6).
# ---------------------------------------------------------------------------
def _selftest():
    def bf(x):
        return jnp.asarray(x).astype(jnp.bfloat16).astype(jnp.float32)

    hp = jax.lax.Precision.HIGHEST
    k1, k2, k3, k4, k5, k6 = jax.random.split(jax.random.PRNGKey(42), 6)

    # 3x3 stride-1 pad-1 conv + bias
    x = bf(jax.random.normal(k1, (1, 8, 16, 8), jnp.float32))
    w = bf(jax.random.normal(k2, (3, 3, 8, 16), jnp.float32) * 0.1)
    b = jax.random.normal(k3, (16,), jnp.float32) * 0.1
    got = conv3x3_pallas(x, {"w": w, "shift": b}, "none", out_dtype=jnp.float32)
    ref = jax.lax.conv_general_dilated(x, w, (1, 1), ((1, 1), (1, 1)),
                                       dimension_numbers=("NHWC", "HWIO", "NHWC"),
                                       precision=hp) + b
    np.testing.assert_allclose(np.asarray(got), np.asarray(ref), rtol=1e-2, atol=1e-3)

    # k=4 stride-2 pad-1 conv (space-to-depth path)
    x = bf(jax.random.normal(k4, (1, 8, 8, 4), jnp.float32))
    w4 = bf(jax.random.normal(k5, (4, 4, 4, 8), jnp.float32) * 0.1)
    b4 = jax.random.normal(k6, (8,), jnp.float32) * 0.1
    got = conv_s2d_pallas(x, {"w": _s2d_weights(w4), "shift": b4}, "none",
                          out_dtype=jnp.float32)
    ref = jax.lax.conv_general_dilated(x, w4, (2, 2), ((1, 1), (1, 1)),
                                       dimension_numbers=("NHWC", "HWIO", "NHWC"),
                                       precision=hp) + b4
    np.testing.assert_allclose(np.asarray(got), np.asarray(ref), rtol=1e-2, atol=1e-3)

    # ConvTranspose2d(k=4, s=2, p=1) fused parity kernel vs. a scatter reference
    kx, kw_, kb_ = jax.random.split(jax.random.PRNGKey(7), 3)
    x = bf(jax.random.normal(kx, (1, 4, 4, 4), jnp.float32))
    wt = bf(jax.random.normal(kw_, (4, 8, 4, 4), jnp.float32) * 0.1)   # (Cin,Cout,4,4)
    bt = jax.random.normal(kb_, (8,), jnp.float32) * 0.1
    unit = {"w": _convT_eff_weights(wt), "shift": jnp.tile(bt, 4)}
    got = conv_transpose_pallas(x, unit, "none", out_dtype=jnp.float32)
    xn, wn, bn = np.asarray(x[0]), np.asarray(wt), np.asarray(bt)
    H, W, _ = xn.shape
    full = np.zeros((2 * H + 2, 2 * W + 2, wn.shape[1]), np.float32)
    for ih in range(H):
        for iw in range(W):
            for kh in range(4):
                for kw in range(4):
                    full[2 * ih + kh, 2 * iw + kw] += xn[ih, iw] @ wn[:, :, kh, kw]
    ref = full[1:2 * H + 1, 1:2 * W + 1] + bn
    np.testing.assert_allclose(np.asarray(got[0]), ref, rtol=1e-2, atol=1e-3)


# ---------------------------------------------------------------------------
# Main
# ---------------------------------------------------------------------------
if __name__ == "__main__":
    _selftest()

    key = jax.random.PRNGKey(0)
    k_param, k_audio, k_vis = jax.random.split(key, 3)

    # Smallest config consistent with the module: the source detector's
    # Linear(32, 1) forces the bottleneck feature map to be 4x4, i.e. a
    # (1024, 256) spectrogram; channel widths are scaled down via ngf=16.
    NGF = 16
    params = init_audionet_params(k_param, ngf=NGF, input_nc=2, output_nc=2,
                                  audioVisual_feature_dim=NGF * 8, use_norm=True)

    audio_mix_stft = jax.random.normal(k_audio, (1, 2, 1024, 256), jnp.float32) * 0.5
    visual_feat = jax.random.normal(k_vis, (1, 512), jnp.float32)   # unused (use_visual=False)

    forward = jax.jit(audionet_forward, static_argnames=("disable_detection",))
    pred_stft, conv8_feat, source_det = forward(
        params, audio_mix_stft, visual_feat, disable_detection=False)
    jax.block_until_ready((pred_stft, conv8_feat, source_det))

    assert pred_stft.shape == (1, 2, 1024, 256), pred_stft.shape
    assert conv8_feat.shape == (1, NGF * 8, 4, 4), conv8_feat.shape
    assert source_det.shape == (1, 1), source_det.shape
    assert bool(jnp.isfinite(pred_stft).all())
    assert bool(jnp.isfinite(conv8_feat).all())
    assert bool(jnp.isfinite(source_det).all())

    print("KERNEL_OK")
</pallas_src>

<mosaic_0001>
module attributes {stable_mosaic.version = 11 : i64} {
  func.func @_conv_s1_kernel(%arg0: i32, %arg1: i32, %arg2: memref<1x10x18x8xbf16, #tpu.memory_space<vmem>>, %arg3: memref<72x16xbf16, #tpu.memory_space<vmem>>, %arg4: memref<1x16xf32, #tpu.memory_space<vmem>>, %arg5: memref<1x4x16x16xf32, #tpu.memory_space<vmem>>) attributes {dimension_semantics = [#tpu.dimension_semantics<parallel>, #tpu.dimension_semantics<parallel>], iteration_bounds = array<i64: 1, 2>, scalar_prefetch = 0 : i64, scratch_operands = 0 : i64, tpu.core_type = #tpu.core_type<tc>, window_params = [{transform_indices = @transform_0, window_bounds = array<i64: 1, 10, 18, 8>}, {pipeline_mode = #tpu.pipeline_mode<synchronous>, transform_indices = @transform_1, window_bounds = array<i64: 72, 16>}, {pipeline_mode = #tpu.pipeline_mode<synchronous>, transform_indices = @transform_2, window_bounds = array<i64: 1, 16>}, {transform_indices = @transform_3, window_bounds = array<i64: 1, 4, 16, 16>}]} {
    %c4_i32 = arith.constant 4 : i32
    %0 = arith.muli %arg1, %c4_i32 : i32
    %1 = tpu.assume_multiple %0, 4 : i32
    %c0_i32 = arith.constant 0 : i32
    %2 = arith.addi %1, %c0_i32 : i32
    %c0 = arith.constant 0 : index
    %3 = arith.index_cast %2 : i32 to index
    %c0_0 = arith.constant 0 : index
    %c0_1 = arith.constant 0 : index
    %4 = vector.load %arg2[%c0, %3, %c0_0, %c0_1] : memref<1x10x18x8xbf16, #tpu.memory_space<vmem>>, vector<1x4x18x8xbf16>
    %5 = vector.shape_cast %4 : vector<1x4x18x8xbf16> to vector<4x18x8xbf16>
    %6 = vector.extract_strided_slice %5 {offsets = [0, 0, 0], sizes = [4, 16, 8], strides = [1, 1, 1]} : vector<4x18x8xbf16> to vector<4x16x8xbf16>
    %7 = vector.shape_cast %6 : vector<4x16x8xbf16> to vector<64x8xbf16>
    %c0_2 = arith.constant 0 : index
    %c0_3 = arith.constant 0 : index
    %8 = vector.load %arg3[%c0_2, %c0_3] : memref<72x16xbf16, #tpu.memory_space<vmem>>, vector<8x16xbf16>
    %cst = arith.constant dense<0.000000e+00> : vector<64x16xf32>
    %9 = tpu.matmul %7, %8, %cst {dimension_numbers = #tpu.dot_dimension_numbers<[1], [0], [0], [1], [0, 0, 1, 1], [], []>} : vector<64x8xbf16>, vector<8x16xbf16>, vector<64x16xf32> -> vector<64x16xf32>
    %10 = vector.extract_strided_slice %5 {offsets = [0, 1, 0], sizes = [4, 16, 8], strides = [1, 1, 1]} : vector<4x18x8xbf16> to vector<4x16x8xbf16>
    %11 = vector.shape_cast %10 : vector<4x16x8xbf16> to vector<64x8xbf16>
    %c8 = arith.constant 8 : index
    %c0_4 = arith.constant 0 : index
    %12 = vector.load %arg3[%c8, %c0_4] : memref<72x16xbf16, #tpu.memory_space<vmem>>, vector<8x16xbf16>
    %cst_5 = arith.constant dense<0.000000e+00> : vector<64x16xf32>
    %13 = tpu.matmul %11, %12, %cst_5 {dimension_numbers = #tpu.dot_dimension_numbers<[1], [0], [0], [1], [0, 0, 1, 1], [], []>} : vector<64x8xbf16>, vector<8x16xbf16>, vector<64x16xf32> -> vector<64x16xf32>
    %14 = arith.addf %9, %13 : vector<64x16xf32>
    %15 = vector.extract_strided_slice %5 {offsets = [0, 2, 0], sizes = [4, 16, 8], strides = [1, 1, 1]} : vector<4x18x8xbf16> to vector<4x16x8xbf16>
    %16 = vector.shape_cast %15 : vector<4x16x8xbf16> to vector<64x8xbf16>
    %c16 = arith.constant 16 : index
    %c0_6 = arith.constant 0 : index
    %17 = vector.load %arg3[%c16, %c0_6] : memref<72x16xbf16, #tpu.memory_space<vmem>>, vector<8x16xbf16>
    %cst_7 = arith.constant dense<0.000000e+00> : vector<64x16xf32>
    %18 = tpu.matmul %16, %17, %cst_7 {dimension_numbers = #tpu.dot_dimension_numbers<[1], [0], [0], [1], [0, 0, 1, 1], [], []>} : vector<64x8xbf16>, vector<8x16xbf16>, vector<64x16xf32> -> vector<64x16xf32>
    %19 = arith.addf %14, %18 : vector<64x16xf32>
    %c1_i32 = arith.constant 1 : i32
    %20 = arith.addi %1, %c1_i32 : i32
    %c0_8 = arith.constant 0 : index
    %21 = arith.index_cast %20 : i32 to index
    %c0_9 = arith.constant 0 : index
    %c0_10 = arith.constant 0 : index
    %22 = vector.load %arg2[%c0_8, %21, %c0_9, %c0_10] : memref<1x10x18x8xbf16, #tpu.memory_space<vmem>>, vector<1x4x18x8xbf16>
    %23 = vector.shape_cast %22 : vector<1x4x18x8xbf16> to vector<4x18x8xbf16>
    %24 = vector.extract_strided_slice %23 {offsets = [0, 0, 0], sizes = [4, 16, 8], strides = [1, 1, 1]} : vector<4x18x8xbf16> to vector<4x16x8xbf16>
    %25 = vector.shape_cast %24 : vector<4x16x8xbf16> to vector<64x8xbf16>
    %c24 = arith.constant 24 : index
    %c0_11 = arith.constant 0 : index
    %26 = vector.load %arg3[%c24, %c0_11] : memref<72x16xbf16, #tpu.memory_space<vmem>>, vector<8x16xbf16>
    %cst_12 = arith.constant dense<0.000000e+00> : vector<64x16xf32>
    %27 = tpu.matmul %25, %26, %cst_12 {dimension_numbers = #tpu.dot_dimension_numbers<[1], [0], [0], [1], [0, 0, 1, 1], [], []>} : vector<64x8xbf16>, vector<8x16xbf16>, vector<64x16xf32> -> vector<64x16xf32>
    %28 = arith.addf %19, %27 : vector<64x16xf32>
    %29 = vector.extract_strided_slice %23 {offsets = [0, 1, 0], sizes = [4, 16, 8], strides = [1, 1, 1]} : vector<4x18x8xbf16> to vector<4x16x8xbf16>
    %30 = vector.shape_cast %29 : vector<4x16x8xbf16> to vector<64x8xbf16>
    %c32 = arith.constant 32 : index
    %c0_13 = arith.constant 0 : index
    %31 = vector.load %arg3[%c32, %c0_13] : memref<72x16xbf16, #tpu.memory_space<vmem>>, vector<8x16xbf16>
    %cst_14 = arith.constant dense<0.000000e+00> : vector<64x16xf32>
    %32 = tpu.matmul %30, %31, %cst_14 {dimension_numbers = #tpu.dot_dimension_numbers<[1], [0], [0], [1], [0, 0, 1, 1], [], []>} : vector<64x8xbf16>, vector<8x16xbf16>, vector<64x16xf32> -> vector<64x16xf32>
    %33 = arith.addf %28, %32 : vector<64x16xf32>
    %34 = vector.extract_strided_slice %23 {offsets = [0, 2, 0], sizes = [4, 16, 8], strides = [1, 1, 1]} : vector<4x18x8xbf16> to vector<4x16x8xbf16>
    %35 = vector.shape_cast %34 : vector<4x16x8xbf16> to vector<64x8xbf16>
    %c40 = arith.constant 40 : index
    %c0_15 = arith.constant 0 : index
    %36 = vector.load %arg3[%c40, %c0_15] : memref<72x16xbf16, #tpu.memory_space<vmem>>, vector<8x16xbf16>
    %cst_16 = arith.constant dense<0.000000e+00> : vector<64x16xf32>
    %37 = tpu.matmul %35, %36, %cst_16 {dimension_numbers = #tpu.dot_dimension_numbers<[1], [0], [0], [1], [0, 0, 1, 1], [], []>} : vector<64x8xbf16>, vector<8x16xbf16>, vector<64x16xf32> -> vector<64x16xf32>
    %38 = arith.addf %33, %37 : vector<64x16xf32>
    %c2_i32 = arith.constant 2 : i32
    %39 = arith.addi %1, %c2_i32 : i32
    %c0_17 = arith.constant 0 : index
    %40 = arith.index_cast %39 : i32 to index
    %c0_18 = arith.constant 0 : index
    %c0_19 = arith.constant 0 : index
    %41 = vector.load %arg2[%c0_17, %40, %c0_18, %c0_19] : memref<1x10x18x8xbf16, #tpu.memory_space<vmem>>, vector<1x4x18x8xbf16>
    %42 = vector.shape_cast %41 : vector<1x4x18x8xbf16> to vector<4x18x8xbf16>
    %43 = vector.extract_strided_slice %42 {offsets = [0, 0, 0], sizes = [4, 16, 8], strides = [1, 1, 1]} : vector<4x18x8xbf16> to vector<4x16x8xbf16>
    %44 = vector.shape_cast %43 : vector<4x16x8xbf16> to vector<64x8xbf16>
    %c48 = arith.constant 48 : index
    %c0_20 = arith.constant 0 : index
    %45 = vector.load %arg3[%c48, %c0_20] : memref<72x16xbf16, #tpu.memory_space<vmem>>, vector<8x16xbf16>
    %cst_21 = arith.constant dense<0.000000e+00> : vector<64x16xf32>
    %46 = tpu.matmul %44, %45, %cst_21 {dimension_numbers = #tpu.dot_dimension_numbers<[1], [0], [0], [1], [0, 0, 1, 1], [], []>} : vector<64x8xbf16>, vector<8x16xbf16>, vector<64x16xf32> -> vector<64x16xf32>
    %47 = arith.addf %38, %46 : vector<64x16xf32>
    %48 = vector.extract_strided_slice %42 {offsets = [0, 1, 0], sizes = [4, 16, 8], strides = [1, 1, 1]} : vector<4x18x8xbf16> to vector<4x16x8xbf16>
    %49 = vector.shape_cast %48 : vector<4x16x8xbf16> to vector<64x8xbf16>
    %c56 = arith.constant 56 : index
    %c0_22 = arith.constant 0 : index
    %50 = vector.load %arg3[%c56, %c0_22] : memref<72x16xbf16, #tpu.memory_space<vmem>>, vector<8x16xbf16>
    %cst_23 = arith.constant dense<0.000000e+00> : vector<64x16xf32>
    %51 = tpu.matmul %49, %50, %cst_23 {dimension_numbers = #tpu.dot_dimension_numbers<[1], [0], [0], [1], [0, 0, 1, 1], [], []>} : vector<64x8xbf16>, vector<8x16xbf16>, vector<64x16xf32> -> vector<64x16xf32>
    %52 = arith.addf %47, %51 : vector<64x16xf32>
    %53 = vector.extract_strided_slice %42 {offsets = [0, 2, 0], sizes = [4, 16, 8], strides = [1, 1, 1]} : vector<4x18x8xbf16> to vector<4x16x8xbf16>
    %54 = vector.shape_cast %53 : vector<4x16x8xbf16> to vector<64x8xbf16>
    %c64 = arith.constant 64 : index
    %c0_24 = arith.constant 0 : index
    %55 = vector.load %arg3[%c64, %c0_24] : memref<72x16xbf16, #tpu.memory_space<vmem>>, vector<8x16xbf16>
    %cst_25 = arith.constant dense<0.000000e+00> : vector<64x16xf32>
    %56 = tpu.matmul %54, %55, %cst_25 {dimension_numbers = #tpu.dot_dimension_numbers<[1], [0], [0], [1], [0, 0, 1, 1], [], []>} : vector<64x8xbf16>, vector<8x16xbf16>, vector<64x16xf32> -> vector<64x16xf32>
    %57 = arith.addf %52, %56 : vector<64x16xf32>
    %c0_26 = arith.constant 0 : index
    %c0_27 = arith.constant 0 : index
    %58 = vector.load %arg4[%c0_26, %c0_27] : memref<1x16xf32, #tpu.memory_space<vmem>>, vector<1x16xf32>
    %59 = vector.broadcast %58 : vector<1x16xf32> to vector<64x16xf32>
    %60 = arith.addf %57, %59 : vector<64x16xf32>
    %61 = vector.shape_cast %60 : vector<64x16xf32> to vector<4x16x16xf32>
    %c0_28 = arith.constant 0 : index
    %c0_29 = arith.constant 0 : index
    %c0_30 = arith.constant 0 : index
    %c0_31 = arith.constant 0 : index
    %62 = vector.load %arg5[%c0_28, %c0_29, %c0_30, %c0_31] : memref<1x4x16x16xf32, #tpu.memory_space<vmem>>, vector<1x4x16x16xf32>
    %63 = vector.shape_cast %62 : vector<1x4x16x16xf32> to vector<4x16x16xf32>
    %64 = vector.shape_cast %61 : vector<4x16x16xf32> to vector<1x4x16x16xf32>
    tpu.vector_store %arg5[%c0_28, %c0_29, %c0_30, %c0_31], %64 {strides = array<i32>} : memref<1x4x16x16xf32, #tpu.memory_space<vmem>>, vector<1x4x16x16xf32>,
    return
  }
  func.func @transform_0(%arg0: i32, %arg1: i32) -> (i32, i32, i32, i32) {
    %c0_i32 = arith.constant 0 : i32
    %c0_i32_0 = arith.constant 0 : i32
    %c0_i32_1 = arith.constant 0 : i32
    %c0_i32_2 = arith.constant 0 : i32
    return %arg0, %c0_i32, %c0_i32_0, %c0_i32_1 : i32, i32, i32, i32
  }
  func.func @transform_1(%arg0: i32, %arg1: i32) -> (i32, i32) {
    %c0_i32 = arith.constant 0 : i32
    %c0_i32_0 = arith.constant 0 : i32
    %c0_i32_1 = arith.constant 0 : i32
    return %c0_i32, %c0_i32_0 : i32, i32
  }
  func.func @transform_2(%arg0: i32, %arg1: i32) -> (i32, i32) {
    %c0_i32 = arith.constant 0 : i32
    %c0_i32_0 = arith.constant 0 : i32
    %c0_i32_1 = arith.constant 0 : i32
    return %c0_i32, %c0_i32_0 : i32, i32
  }
  func.func @transform_3(%arg0: i32, %arg1: i32) -> (i32, i32, i32, i32) {
    %c0_i32 = arith.constant 0 : i32
    %c0_i32_0 = arith.constant 0 : i32
    %c0_i32_1 = arith.constant 0 : i32
    return %arg0, %arg1, %c0_i32, %c0_i32_0 : i32, i32, i32, i32
  }
}

</mosaic_0001>

<llo_original>
// kernel: tpu_custom_call.1
$region0: #{tpu_custom_call.1}
  #allocation0 [shape = 'u32[]', space=smem, size = 0x4, offset = 0x4, fixed_abs, tag = 'smem constant byte address 0x4 - core index']
  #allocation1 [shape = 'u32[144,128]{1,0:T(1,128)}', space=vmem, size = 0x12000, scoped, tag = 'internal scratch']
  %s0 = inlined_call_operand.vmem [shape: bf16[1,10,18,8], index: 0, kind: input, shape index: {}]
  %s1 = inlined_call_operand.vmem [shape: bf16[72,16], index: 1, kind: input, shape index: {}]
  %s2 = inlined_call_operand.vmem [shape: f32[1,16], index: 2, kind: input, shape index: {}]
  %s3 = inlined_call_operand.hbm [shape: f32[1,8,16,16], index: 3, kind: output, shape index: {}]
  %s4 = sld [smem:[#allocation0]]
  $region45: #{tpu_custom_call.1} parent=0
    _
  %s6 = ssub.s32 1, %s4
  %s7 = scalar_select 0, %s6, %s4
  $region1: #{tpu_custom_call.1} parent=0
    #allocation2 [shape = 'u8[65536]{0}', space=vmem, size = 0x10000, scoped, tag = 'output window, operand 0']
    #allocation3 [shape = 's32[2]{0}', space=sflag, size = 0x8, scoped, tag = 'scoped memory for tpu_custom_call.1']
    %8 = vsyncpa [#allocation3], 0
    %s9 = scalar_lea.sflag [#allocation3], 1
    %10 = vsyncpa %s9, 0
    loop: start=0, step=1, limit=4
    $region2: #{tpu_custom_call.1} parent=1 // loop_pre_header
      _
    $region3: #{tpu_custom_call.1} parent=1 // loop_header
      %s12 = sphi 0, %s16
      %p13 = scmp.ge.s32.totalorder %s12, 4
      %s19 = sphi 0, %s31
      %s20 = sphi 0, %s27
      %s21 = sphi 0, %s19
      %s22 = sphi 0, %s20
      %s23 = sphi 0, %s21
      %s24 = sphi 0, %s22
      %s34 = sphi 0, %s36
      %s37 = sphi 0, %s34
      %s38 = sphi 0, %s37
      %s54 = sphi 0, %s38
      %s58 = sphi 0, %s58
      %s60 = sphi 0, %s58
      %s61 = sphi 0, %s60
      %s75 = sphi 0, %s61
      %s79 = sphi 0, %s79
      %s81 = sphi 0, %s79
      %s82 = sphi 0, %s81
      %s96 = sphi 0, %s82
      %s104 = sphi 0, %s106
      %s107 = sphi 0, %s104
      %s108 = sphi 0, %s107
      %s124 = sphi 0, %s108
    $region4: #{tpu_custom_call.1} parent=1 // loop_header_branch
      %15 = sbr.rel (%p13) target = $region8
    $region5: #{tpu_custom_call.1} parent=1 // loop_body
      %s17 = ssub.s32 %s12, 1
      %s18 = ssub.s32 %s12, 2
      %s25 = sadd.s32 1, %s20
      %p26 = scmp.ge.s32.totalorder %s25, 2
      %s27 = scalar_select %p26, 0, %s25
      %s28 = sadd.s32 1, %s19
      %s29 = scalar_select %p26, %s28, %s19
      %p30 = scmp.ge.s32.totalorder %s29, 1
      %s31 = scalar_select %p30, 0, %s29
      %s32 = ssub.s32 %s19, %s31
      %p33 = scmp.eq.s32.totalorder %s32, 0
      %s35 = sadd.s32 %s34, 1
      %s36 = scalar_select %p33, %s34, %s35
      %p39 = pneg %p33
      %p40 = scmp.eq.s32.totalorder %s12, 1
      %p41 = por %p39, %p40
      %p42 = scmp.ne.s32.totalorder %s34, %s37
      %p43 = scmp.eq.s32.totalorder %s12, 0
      %p44 = por %p42, %p43
      %p45 = scmp.ne.s32.totalorder %s34, %s37
      %p46 = scmp.eq.s32.totalorder %s17, 1
      %p47 = por %p45, %p46
      %p48 = scmp.ne.s32.totalorder %s37, %s38
      %p49 = scmp.eq.s32.totalorder %s17, 0
      %p50 = por %p48, %p49
      %p51 = scmp.ne.s32.totalorder %s37, %s38
      %p52 = scmp.eq.s32.totalorder %s18, 1
      %p53 = por %p51, %p52
      %p55 = scmp.ne.s32.totalorder %s38, %s54
      %p56 = scmp.eq.s32.totalorder %s18, 0
      %p57 = por %p55, %p56
      %s59 = sadd.s32 %s58, 1
      %p62 = scmp.eq.s32.totalorder %s12, 1
      %p63 = scmp.ne.s32.totalorder %s58, %s60
      %p64 = scmp.eq.s32.totalorder %s12, 0
      %p65 = por %p63, %p64
      %p66 = scmp.ne.s32.totalorder %s58, %s60
      %p67 = scmp.eq.s32.totalorder %s17, 1
      %p68 = por %p66, %p67
      %p69 = scmp.ne.s32.totalorder %s60, %s61
      %p70 = scmp.eq.s32.totalorder %s17, 0
      %p71 = por %p69, %p70
      %p72 = scmp.ne.s32.totalorder %s60, %s61
      %p73 = scmp.eq.s32.totalorder %s18, 1
      %p74 = por %p72, %p73
      %p76 = scmp.ne.s32.totalorder %s61, %s75
      %p77 = scmp.eq.s32.totalorder %s18, 0
      %p78 = por %p76, %p77
      %s80 = sadd.s32 %s79, 1
      %p83 = scmp.eq.s32.totalorder %s12, 1
      %p84 = scmp.ne.s32.totalorder %s79, %s81
      %p85 = scmp.eq.s32.totalorder %s12, 0
      %p86 = por %p84, %p85
      %p87 = scmp.ne.s32.totalorder %s79, %s81
      %p88 = scmp.eq.s32.totalorder %s17, 1
      %p89 = por %p87, %p88
      %p90 = scmp.ne.s32.totalorder %s81, %s82
      %p91 = scmp.eq.s32.totalorder %s17, 0
      %p92 = por %p90, %p91
      %p93 = scmp.ne.s32.totalorder %s81, %s82
      %p94 = scmp.eq.s32.totalorder %s18, 1
      %p95 = por %p93, %p94
      %p97 = scmp.ne.s32.totalorder %s82, %s96
      %p98 = scmp.eq.s32.totalorder %s18, 0
      %p99 = por %p97, %p98
      %s100 = ssub.s32 %s19, %s31
      %s101 = ssub.s32 %s20, %s27
      %s102 = sor.u32 %s100, %s101
      %p103 = scmp.eq.s32.totalorder %s102, 0
      %s105 = sadd.s32 %s104, 1
      %s106 = scalar_select %p103, %s104, %s105
      %p109 = pneg %p103
      %p110 = scmp.eq.s32.totalorder %s12, 1
      %p111 = por %p109, %p110
      %p112 = scmp.ne.s32.totalorder %s104, %s107
      %p113 = scmp.eq.s32.totalorder %s12, 0
      %p114 = por %p112, %p113
      %p115 = scmp.ne.s32.totalorder %s104, %s107
      %p116 = scmp.eq.s32.totalorder %s17, 1
      %p117 = por %p115, %p116
      %p118 = scmp.ne.s32.totalorder %s107, %s108
      %p119 = scmp.eq.s32.totalorder %s17, 0
      %p120 = por %p118, %p119
      %p121 = scmp.ne.s32.totalorder %s107, %s108
      %p122 = scmp.eq.s32.totalorder %s18, 1
      %p123 = por %p121, %p122
      %p125 = scmp.ne.s32.totalorder %s108, %s124
      %p126 = scmp.eq.s32.totalorder %s18, 0
      %p127 = por %p125, %p126
      %p128 = scmp.le.s32.totalorder 1, %s12
      %p129 = scmp.lt.s32.totalorder %s12, 3
      %p130 = pnand %p128, %p129
      %p131 = pneg %p130
      // Predicated region
      $region9: #{tpu_custom_call.1} parent=5 // pred_check
        _
      $region10: #{tpu_custom_call.1} parent=5 // pred_check_branch
        %133 = sbr.rel (%p130) target = $region12
      $region11: #{tpu_custom_call.1} parent=5 // pred_region
        %s134 = ssub.s32 %s12, 1
        // Predicated region
        $region13: #{tpu_custom_call.1} parent=11 // pred_check
          %p135 = pneg %p50
        $region14: #{tpu_custom_call.1} parent=11 // pred_check_branch
          %137 = sbr.rel (%p135) target = $region16
        $region15: #{tpu_custom_call.1} parent=11 // pred_region
          %p138 = scmp.lt.s32.totalorder %s21, 0
          %s139 = scalar_select %p138, %s21, 0
          %s140 = smul.addr %s139, 30
          %s141 = smul.addr %s140, 4
          %s142 = scalar_lea.vmem %s0, %s141
        $region16: #{tpu_custom_call.1} parent=11 // pred_fallthru
          _
        // Predicated region
        $region17: #{tpu_custom_call.1} parent=11 // pred_check
          %p143 = pneg %p71
        $region18: #{tpu_custom_call.1} parent=11 // pred_check_branch
          %145 = sbr.rel (%p143) target = $region20
        $region19: #{tpu_custom_call.1} parent=11 // pred_region
          _
        $region20: #{tpu_custom_call.1} parent=11 // pred_fallthru
          _
        // Predicated region
        $region21: #{tpu_custom_call.1} parent=11 // pred_check
          %p146 = pneg %p92
        $region22: #{tpu_custom_call.1} parent=11 // pred_check_branch
          %148 = sbr.rel (%p146) target = $region24
        $region23: #{tpu_custom_call.1} parent=11 // pred_region
          _
        $region24: #{tpu_custom_call.1} parent=11 // pred_fallthru
          _
      $region12: #{tpu_custom_call.1} parent=5 // pred_fallthru
        _
      %p149 = scmp.lt.s32.totalorder %s12, 2
      // Predicated region
      $region25: #{tpu_custom_call.1} parent=5 // pred_check
        %p150 = pneg %p149
      $region26: #{tpu_custom_call.1} parent=5 // pred_check_branch
        %152 = sbr.rel (%p150) target = $region28
      $region27: #{tpu_custom_call.1} parent=5 // pred_region
        _
      $region28: #{tpu_custom_call.1} parent=5 // pred_fallthru
        _
      %p153 = scmp.le.s32.totalorder 1, %s12
      %p154 = scmp.lt.s32.totalorder %s12, 3
      %p155 = pnand %p153, %p154
      %p156 = pneg %p155
      // Predicated region
      $region29: #{tpu_custom_call.1} parent=5 // pred_check
        _
      $region30: #{tpu_custom_call.1} parent=5 // pred_check_branch
        %158 = sbr.rel (%p155) target = $region32
      $region31: #{tpu_custom_call.1} parent=5 // pred_region
        %s159 = ssub.s32 %s12, 1
        %p160 = scmp.lt.s32.totalorder %s21, 0
        %s161 = scalar_select %p160, %s21, 0
        %s162 = smul.addr %s161, 30
        %s163 = smul.addr %s162, 4
        %s164 = scalar_lea.vmem %s0, %s163
        %p165 = pneg %p50
        %p166 = pneg %p47
        %p167 = pneg %p71
        %p168 = pneg %p68
        %p169 = pneg %p92
        %p170 = pneg %p89
        %p171 = pneg %p120
        %p172 = pneg %p117
        %s173 = sand.u32 %s107, 1
        %s174 = scalar_lea.sflag [#allocation3], %s173
        %s175 = sand.u32 %s107, 1
        %s176 = smul.addr %s175, 64
        %s177 = scalar_lea.vmem [#allocation2], %s176
        %p178 = scmp.lt.s32.totalorder %s21, 0
        %s179 = scalar_select %p178, %s21, 0
        %s180 = smul.addr %s179, 30
        %s181 = smul.addr %s180, 4
        %s182 = scalar_lea.vmem %s0, %s181
        %s183 = smul.u32 4, %s22
        %s185 = smul.u32 %s22, 4
        %s186 = smul.u32 %s185, 3
        %s187 = smul.addr %s186, 4
        %s188 = scalar_lea.vmem %s182, %s187
        %v189 = vld [vmem:[%s188] sm:$0xf]
        %v190 = vld [vmem:[%s188 + $0x4] sm:$0xf]
        %v191 = vld [vmem:[%s188 + $0x8] sm:$0x1]
        %v192 = vld [vmem:[%s188 + $0xc] sm:$0xf]
        %v193 = vld [vmem:[%s188 + $0x10] sm:$0xf]
        %v194 = vld [vmem:[%s188 + $0x14] sm:$0x1]
        %v195 = vld [vmem:[%s188 + $0x18] sm:$0xf]
        %v196 = vld [vmem:[%s188 + $0x1c] sm:$0xf]
        %v197 = vld [vmem:[%s188 + $0x20] sm:$0x1]
        %v198 = vld [vmem:[%s188 + $0x24] sm:$0xf]
        %v199 = vld [vmem:[%s188 + $0x28] sm:$0xf]
        %v200 = vld [vmem:[%s188 + $0x2c] sm:$0x1]
        %v201 = vld [vmem:[%s1] sm:$0xf]
        %vm202 = vsmask.f32 3328
        %vm203 = vsmask.f32 7440
        %vm204 = vmor %vm202, %vm203
        %v206 = vshrl.u32 %v189, 16
        %v208 = vrot.slane %v206, 4
        %v209 = vshll.u32 %v189, 16
        %v211 = vrot.slane %v209, 5
        %v212 = vor.u32 %v208, %v211
        %v213 = vrot.slane %v212, 4
        %v215 = vshll.u32 %v190, 16
        %v217 = vrot.slane %v215, 5
        %v218 = vsel %vm204, %v213, %v217
        %v219 = vshrl.u32 %v190, 16
        %v221 = vrot.slane %v219, 4
        %v222 = vor.u32 %v221, %v217
        %v223 = vrot.slane %v222, 4
        %v225 = vshll.u32 %v191, 16
        %v227 = vrot.slane %v225, 5
        %v228 = vsel %vm204, %v223, %v227
        %v230 = vshrl.u32 %v192, 16
        %v232 = vrot.slane %v230, 4
        %v233 = vshll.u32 %v192, 16
        %v235 = vrot.slane %v233, 5
        %v236 = vor.u32 %v232, %v235
        %v237 = vrot.slane %v236, 4
        %v239 = vshll.u32 %v193, 16
        %v241 = vrot.slane %v239, 5
        %v242 = vsel %vm204, %v237, %v241
        %v243 = vshrl.u32 %v193, 16
        %v245 = vrot.slane %v243, 4
        %v246 = vor.u32 %v245, %v241
        %v247 = vrot.slane %v246, 4
        %v249 = vshll.u32 %v194, 16
        %v251 = vrot.slane %v249, 5
        %v252 = vsel %vm204, %v247, %v251
        %v254 = vshrl.u32 %v195, 16
        %v256 = vrot.slane %v254, 4
        %v257 = vshll.u32 %v195, 16
        %v259 = vrot.slane %v257, 5
        %v260 = vor.u32 %v256, %v259
        %v261 = vrot.slane %v260, 4
        %v263 = vshll.u32 %v196, 16
        %v265 = vrot.slane %v263, 5
        %v266 = vsel %vm204, %v261, %v265
        %v267 = vshrl.u32 %v196, 16
        %v269 = vrot.slane %v267, 4
        %v270 = vor.u32 %v269, %v265
        %v271 = vrot.slane %v270, 4
        %v273 = vshll.u32 %v197, 16
        %v275 = vrot.slane %v273, 5
        %v276 = vsel %vm204, %v271, %v275
        %v278 = vshrl.u32 %v198, 16
        %v280 = vrot.slane %v278, 4
        %v281 = vshll.u32 %v198, 16
        %v283 = vrot.slane %v281, 5
        %v284 = vor.u32 %v280, %v283
        %v285 = vrot.slane %v284, 4
        %v287 = vshll.u32 %v199, 16
        %v289 = vrot.slane %v287, 5
        %v290 = vsel %vm204, %v285, %v289
        %v291 = vshrl.u32 %v199, 16
        %v293 = vrot.slane %v291, 4
        %v294 = vor.u32 %v293, %v289
        %v295 = vrot.slane %v294, 4
        %v297 = vshll.u32 %v200, 16
        %v299 = vrot.slane %v297, 5
        %v300 = vsel %vm204, %v295, %v299
        %v301 = vld [vmem:[%s1 + $0x4] sm:$0xf]
        %v302 = vunpack.c.l.b16 %v218
        %v303 = vunpack.c.l.b16 %v228
        %v304 = vunpack.c.l.b16 %v242
        %v305 = vunpack.c.l.b16 %v252
        %v306 = vunpack.c.l.b16 %v266
        %v307 = vunpack.c.l.b16 %v276
        %v308 = vunpack.c.l.b16 %v290
        %v309 = vunpack.c.l.b16 %v300
        %v310 = vpack.c.b16 %v303, %v302
        %v311 = vpack.c.b16 %v305, %v304
        %v312 = vpack.c.b16 %v307, %v306
        %v313 = vpack.c.b16 %v309, %v308
        %vm314 = vcmask 64512
        %v316 = vsel %vm314, %v310, 0
        %v319 = vsel %vm314, %v311, 0
        %v322 = vsel %vm314, %v312, 0
        %v325 = vsel %vm314, %v313, 0
        %vm327 = vcmask 1043456
        %v329 = vsel %vm327, %v301, 0
        %331 = vmatprep.subr.bf16.mxu0 0
        %332 = vmatpush1.bf16.msra.mxu0 %v329
        %333 = vmatprep.subr.bf16.mxu0 0
        %334 = vmatpush1.bf16.msra.mxu0 0
        %335 = vmatprep.subr.bf16.mxu0 0
        %336 = vmatpush1.bf16.msra.mxu0 0
        %337 = vmatprep.subr.bf16.mxu0 0
        %338 = vmatpush1.bf16.msra.mxu0 0
        %339 = vmatprep.subr.bf16.mxu0 0
        %340 = vmatpush1.bf16.msra.mxu0 0
        %341 = vmatprep.subr.bf16.mxu0 0
        %342 = vmatpush1.bf16.msra.mxu0 0
        %343 = vmatprep.subr.bf16.mxu0 0
        %344 = vmatpush1.bf16.msra.mxu0 0
        %345 = vmatprep.subr.bf16.mxu0 0
        %346 = vmatpush1.bf16.msra.mxu0 0
        %347 = vmatprep.subr.bf16.mxu0 0
        %348 = vmatpush1.bf16.msra.mxu0 0
        %349 = vmatprep.subr.bf16.mxu0 0
        %350 = vmatpush1.bf16.msra.mxu0 0
        %351 = vmatprep.subr.bf16.mxu0 0
        %352 = vmatpush1.bf16.msra.mxu0 0
        %353 = vmatprep.subr.bf16.mxu0 0
        %354 = vmatpush1.bf16.msra.mxu0 0
        %355 = vmatprep.subr.bf16.mxu0 0
        %356 = vmatpush1.bf16.msra.mxu0 0
        %357 = vmatprep.subr.bf16.mxu0 0
        %358 = vmatpush1.bf16.msra.mxu0 0
        %359 = vmatprep.subr.bf16.mxu0 0
        %360 = vmatpush1.bf16.msra.mxu0 0
        %361 = vmatprep.subr.bf16.mxu0 0
        %362 = vmatpush1.bf16.msra.mxu0 0
        %363 = vmatprep.mubr.bf16.mxu0 0
        %364 = vmatmul.mubr.bf16.gmra.mrb[0].mxu0 %v316
        %v365 = vpop.f32.mrb[0].mxu0
        %v366 = vadd.f32 0.0, %v365
        %v367 = vpop.f32.mrb[0].mxu0
        %v368 = vpop.f32.mrb[0].mxu0
        %v369 = vadd.f32 0.0, %v368
        %v370 = vpop.f32.mrb[0].mxu0
        %371 = vmatprep.mubr.bf16.mxu0 0
        %372 = vmatmul.mubr.bf16.gmra.mrb[0].mxu0 %v319
        %v373 = vpop.f32.mrb[0].mxu0
        %v374 = vadd.f32 0.0, %v373
        %v375 = vpop.f32.mrb[0].mxu0
        %v376 = vpop.f32.mrb[0].mxu0
        %v377 = vadd.f32 0.0, %v376
        %v378 = vpop.f32.mrb[0].mxu0
        %379 = vmatprep.mubr.bf16.mxu0 0
        %380 = vmatmul.mubr.bf16.gmra.mrb[0].mxu0 %v322
        %v381 = vpop.f32.mrb[0].mxu0
        %v382 = vadd.f32 0.0, %v381
        %v383 = vpop.f32.mrb[0].mxu0
        %v384 = vpop.f32.mrb[0].mxu0
        %v385 = vadd.f32 0.0, %v384
        %v386 = vpop.f32.mrb[0].mxu0
        %387 = vmatprep.mubr.bf16.mxu0 0
        %388 = vmatmul.mubr.bf16.gmra.mrb[0].mxu0 %v325
        %v389 = vpop.f32.mrb[0].mxu0
        %v390 = vadd.f32 0.0, %v389
        %v391 = vpop.f32.mrb[0].mxu0
        %v392 = vpop.f32.mrb[0].mxu0
        %v393 = vadd.f32 0.0, %v392
        %v394 = vpop.f32.mrb[0].mxu0
        %395 = vdwg.mxu0
        %v404 = vunpack.c.l.b16 %v189
        %v405 = vunpack.c.l.b16 %v190
        %v406 = vunpack.c.l.b16 %v192
        %v407 = vunpack.c.l.b16 %v193
        %v408 = vunpack.c.l.b16 %v195
        %v409 = vunpack.c.l.b16 %v196
        %v410 = vunpack.c.l.b16 %v198
        %v411 = vunpack.c.l.b16 %v199
        %v412 = vpack.c.b16 %v405, %v404
        %v413 = vpack.c.b16 %v407, %v406
        %v414 = vpack.c.b16 %v409, %v408
        %v415 = vpack.c.b16 %v411, %v410
        %v417 = vsel %vm314, %v412, 0
        %v420 = vsel %vm314, %v413, 0
        %v423 = vsel %vm314, %v414, 0
        %v426 = vsel %vm314, %v415, 0
        %v429 = vsel %vm327, %v201, 0
        %431 = vmatprep.subr.bf16.mxu0 0
        %432 = vmatpush1.bf16.msra.mxu0 %v429
        %433 = vmatprep.subr.bf16.mxu0 0
        %434 = vmatpush1.bf16.msra.mxu0 0
        %435 = vmatprep.subr.bf16.mxu0 0
        %436 = vmatpush1.bf16.msra.mxu0 0
        %437 = vmatprep.subr.bf16.mxu0 0
        %438 = vmatpush1.bf16.msra.mxu0 0
        %439 = vmatprep.subr.bf16.mxu0 0
        %440 = vmatpush1.bf16.msra.mxu0 0
        %441 = vmatprep.subr.bf16.mxu0 0
        %442 = vmatpush1.bf16.msra.mxu0 0
        %443 = vmatprep.subr.bf16.mxu0 0
        %444 = vmatpush1.bf16.msra.mxu0 0
        %445 = vmatprep.subr.bf16.mxu0 0
        %446 = vmatpush1.bf16.msra.mxu0 0
        %447 = vmatprep.subr.bf16.mxu0 0
        %448 = vmatpush1.bf16.msra.mxu0 0
        %449 = vmatprep.subr.bf16.mxu0 0
        %450 = vmatpush1.bf16.msra.mxu0 0
        %451 = vmatprep.subr.bf16.mxu0 0
        %452 = vmatpush1.bf16.msra.mxu0 0
        %453 = vmatprep.subr.bf16.mxu0 0
        %454 = vmatpush1.bf16.msra.mxu0 0
        %455 = vmatprep.subr.bf16.mxu0 0
        %456 = vmatpush1.bf16.msra.mxu0 0
        %457 = vmatprep.subr.bf16.mxu0 0
        %458 = vmatpush1.bf16.msra.mxu0 0
        %459 = vmatprep.subr.bf16.mxu0 0
        %460 = vmatpush1.bf16.msra.mxu0 0
        %461 = vmatprep.subr.bf16.mxu0 0
        %462 = vmatpush1.bf16.msra.mxu0 0
        %463 = vmatprep.mubr.bf16.mxu0 0
        %464 = vmatmul.mubr.bf16.gmra.mrb[0].mxu0 %v417
        %v465 = vpop.f32.mrb[0].mxu0
        %v466 = vadd.f32 %v366, %v465
        %v467 = vpop.f32.mrb[0].mxu0
        %v468 = vpop.f32.mrb[0].mxu0
        %v469 = vadd.f32 %v369, %v468
        %v470 = vpop.f32.mrb[0].mxu0
        %471 = vmatprep.mubr.bf16.mxu0 0
        %472 = vmatmul.mubr.bf16.gmra.mrb[0].mxu0 %v420
        %v473 = vpop.f32.mrb[0].mxu0
        %v474 = vadd.f32 %v374, %v473
        %v475 = vpop.f32.mrb[0].mxu0
        %v476 = vpop.f32.mrb[0].mxu0
        %v477 = vadd.f32 %v377, %v476
        %v478 = vpop.f32.mrb[0].mxu0
        %479 = vmatprep.mubr.bf16.mxu0 0
        %480 = vmatmul.mubr.bf16.gmra.mrb[0].mxu0 %v423
        %v481 = vpop.f32.mrb[0].mxu0
        %v482 = vadd.f32 %v382, %v481
        %v483 = vpop.f32.mrb[0].mxu0
        %v484 = vpop.f32.mrb[0].mxu0
        %v485 = vadd.f32 %v385, %v484
        %v486 = vpop.f32.mrb[0].mxu0
        %487 = vmatprep.mubr.bf16.mxu0 0
        %488 = vmatmul.mubr.bf16.gmra.mrb[0].mxu0 %v426
        %v489 = vpop.f32.mrb[0].mxu0
        %v490 = vadd.f32 %v390, %v489
        %v491 = vpop.f32.mrb[0].mxu0
        %v492 = vpop.f32.mrb[0].mxu0
        %v493 = vadd.f32 %v393, %v492
        %v494 = vpop.f32.mrb[0].mxu0
        %495 = vdwg.mxu0
        %vm500 = vcmask 1042432
        %vm501 = vcmask 1046532
        %vm502 = vmor %vm500, %vm501
        %v503 = vrot.slane %v189, 5
        %v504 = vrot.slane %v503, 4
        %v505 = vrot.slane %v190, 5
        %v506 = vsel %vm502, %v504, %v505
        %v507 = vrot.slane %v505, 4
        %v508 = vrot.slane %v191, 5
        %v509 = vsel %vm502, %v507, %v508
        %v510 = vrot.slane %v192, 5
        %v511 = vrot.slane %v510, 4
        %v512 = vrot.slane %v193, 5
        %v513 = vsel %vm502, %v511, %v512
        %v514 = vrot.slane %v512, 4
        %v515 = vrot.slane %v194, 5
        %v516 = vsel %vm502, %v514, %v515
        %v517 = vrot.slane %v195, 5
        %v518 = vrot.slane %v517, 4
        %v519 = vrot.slane %v196, 5
        %v520 = vsel %vm502, %v518, %v519
        %v521 = vrot.slane %v519, 4
        %v522 = vrot.slane %v197, 5
        %v523 = vsel %vm502, %v521, %v522
        %v524 = vrot.slane %v198, 5
        %v525 = vrot.slane %v524, 4
        %v526 = vrot.slane %v199, 5
        %v527 = vsel %vm502, %v525, %v526
        %v528 = vrot.slane %v526, 4
        %v529 = vrot.slane %v200, 5
        %v530 = vsel %vm502, %v528, %v529
        %v531 = vld [vmem:[%s1 + $0x8] sm:$0xf]
        %v532 = vunpack.c.l.b16 %v506
        %v533 = vunpack.c.l.b16 %v509
        %v534 = vunpack.c.l.b16 %v513
        %v535 = vunpack.c.l.b16 %v516
        %v536 = vunpack.c.l.b16 %v520
        %v537 = vunpack.c.l.b16 %v523
        %v538 = vunpack.c.l.b16 %v527
        %v539 = vunpack.c.l.b16 %v530
        %v540 = vpack.c.b16 %v533, %v532
        %v541 = vpack.c.b16 %v535, %v534
        %v542 = vpack.c.b16 %v537, %v536
        %v543 = vpack.c.b16 %v539, %v538
        %v545 = vsel %vm314, %v540, 0
        %v548 = vsel %vm314, %v541, 0
        %v551 = vsel %vm314, %v542, 0
        %v554 = vsel %vm314, %v543, 0
        %v557 = vsel %vm327, %v531, 0
        %559 = vmatprep.subr.bf16.mxu0 0
        %560 = vmatpush1.bf16.msra.mxu0 %v557
        %561 = vmatprep.subr.bf16.mxu0 0
        %562 = vmatpush1.bf16.msra.mxu0 0
        %563 = vmatprep.subr.bf16.mxu0 0
        %564 = vmatpush1.bf16.msra.mxu0 0
        %565 = vmatprep.subr.bf16.mxu0 0
        %566 = vmatpush1.bf16.msra.mxu0 0
        %567 = vmatprep.subr.bf16.mxu0 0
        %568 = vmatpush1.bf16.msra.mxu0 0
        %569 = vmatprep.subr.bf16.mxu0 0
        %570 = vmatpush1.bf16.msra.mxu0 0
        %571 = vmatprep.subr.bf16.mxu0 0
        %572 = vmatpush1.bf16.msra.mxu0 0
        %573 = vmatprep.subr.bf16.mxu0 0
        %574 = vmatpush1.bf16.msra.mxu0 0
        %575 = vmatprep.subr.bf16.mxu0 0
        %576 = vmatpush1.bf16.msra.mxu0 0
        %577 = vmatprep.subr.bf16.mxu0 0
        %578 = vmatpush1.bf16.msra.mxu0 0
        %579 = vmatprep.subr.bf16.mxu0 0
        %580 = vmatpush1.bf16.msra.mxu0 0
        %581 = vmatprep.subr.bf16.mxu0 0
        %582 = vmatpush1.bf16.msra.mxu0 0
        %583 = vmatprep.subr.bf16.mxu0 0
        %584 = vmatpush1.bf16.msra.mxu0 0
        %585 = vmatprep.subr.bf16.mxu0 0
        %586 = vmatpush1.bf16.msra.mxu0 0
        %587 = vmatprep.subr.bf16.mxu0 0
        %588 = vmatpush1.bf16.msra.mxu0 0
        %589 = vmatprep.subr.bf16.mxu0 0
        %590 = vmatpush1.bf16.msra.mxu0 0
        %591 = vmatprep.mubr.bf16.mxu0 0
        %592 = vmatmul.mubr.bf16.gmra.mrb[0].mxu0 %v545
        %v593 = vpop.f32.mrb[0].mxu0
        %v594 = vadd.f32 0.0, %v593
        %v595 = vpop.f32.mrb[0].mxu0
        %v596 = vpop.f32.mrb[0].mxu0
        %v597 = vadd.f32 0.0, %v596
        %v598 = vpop.f32.mrb[0].mxu0
        %599 = vmatprep.mubr.bf16.mxu0 0
        %600 = vmatmul.mubr.bf16.gmra.mrb[0].mxu0 %v548
        %v601 = vpop.f32.mrb[0].mxu0
        %v602 = vadd.f32 0.0, %v601
        %v603 = vpop.f32.mrb[0].mxu0
        %v604 = vpop.f32.mrb[0].mxu0
        %v605 = vadd.f32 0.0, %v604
        %v606 = vpop.f32.mrb[0].mxu0
        %607 = vmatprep.mubr.bf16.mxu0 0
        %608 = vmatmul.mubr.bf16.gmra.mrb[0].mxu0 %v551
        %v609 = vpop.f32.mrb[0].mxu0
        %v610 = vadd.f32 0.0, %v609
        %v611 = vpop.f32.mrb[0].mxu0
        %v612 = vpop.f32.mrb[0].mxu0
        %v613 = vadd.f32 0.0, %v612
        %v614 = vpop.f32.mrb[0].mxu0
        %615 = vmatprep.mubr.bf16.mxu0 0
        %616 = vmatmul.mubr.bf16.gmra.mrb[0].mxu0 %v554
        %v617 = vpop.f32.mrb[0].mxu0
        %v618 = vadd.f32 0.0, %v617
        %v619 = vpop.f32.mrb[0].mxu0
        %v620 = vpop.f32.mrb[0].mxu0
        %v621 = vadd.f32 0.0, %v620
        %v622 = vpop.f32.mrb[0].mxu0
        %623 = vdwg.mxu0
        %v624 = vadd.f32 %v466, %v594
        %v625 = vadd.f32 %v469, %v597
        %v626 = vadd.f32 %v474, %v602
        %v627 = vadd.f32 %v477, %v605
        %v628 = vadd.f32 %v482, %v610
        %v629 = vadd.f32 %v485, %v613
        %v630 = vadd.f32 %v490, %v618
        %v631 = vadd.f32 %v493, %v621
        %s632 = sadd.s32 %s185, 1
        %s633 = smul.u32 %s632, 3
        %s634 = smul.addr %s633, 4
        %s635 = scalar_lea.vmem %s182, %s634
        %v636 = vld [vmem:[%s635] sm:$0xf]
        %v637 = vld [vmem:[%s635 + $0x4] sm:$0xf]
        %v638 = vld [vmem:[%s635 + $0x8] sm:$0x1]
        %v639 = vld [vmem:[%s635 + $0xc] sm:$0xf]
        %v640 = vld [vmem:[%s635 + $0x10] sm:$0xf]
        %v641 = vld [vmem:[%s635 + $0x14] sm:$0x1]
        %v642 = vld [vmem:[%s635 + $0x18] sm:$0xf]
        %v643 = vld [vmem:[%s635 + $0x1c] sm:$0xf]
        %v644 = vld [vmem:[%s635 + $0x20] sm:$0x1]
        %v645 = vld [vmem:[%s635 + $0x24] sm:$0xf]
        %v646 = vld [vmem:[%s635 + $0x28] sm:$0xf]
        %v647 = vld [vmem:[%s635 + $0x2c] sm:$0x1]
        %v648 = vld [vmem:[%s1 + $0xc] sm:$0xf]
        %v657 = vunpack.c.l.b16 %v636
        %v658 = vunpack.c.l.b16 %v637
        %v659 = vunpack.c.l.b16 %v639
        %v660 = vunpack.c.l.b16 %v640
        %v661 = vunpack.c.l.b16 %v642
        %v662 = vunpack.c.l.b16 %v643
        %v663 = vunpack.c.l.b16 %v645
        %v664 = vunpack.c.l.b16 %v646
        %v665 = vpack.c.b16 %v658, %v657
        %v666 = vpack.c.b16 %v660, %v659
        %v667 = vpack.c.b16 %v662, %v661
        %v668 = vpack.c.b16 %v664, %v663
        %v670 = vsel %vm314, %v665, 0
        %v673 = vsel %vm314, %v666, 0
        %v676 = vsel %vm314, %v667, 0
        %v679 = vsel %vm314, %v668, 0
        %v682 = vsel %vm327, %v648, 0
        %684 = vmatprep.subr.bf16.mxu0 0
        %685 = vmatpush1.bf16.msra.mxu0 %v682
        %686 = vmatprep.subr.bf16.mxu0 0
        %687 = vmatpush1.bf16.msra.mxu0 0
        %688 = vmatprep.subr.bf16.mxu0 0
        %689 = vmatpush1.bf16.msra.mxu0 0
        %690 = vmatprep.subr.bf16.mxu0 0
        %691 = vmatpush1.bf16.msra.mxu0 0
        %692 = vmatprep.subr.bf16.mxu0 0
        %693 = vmatpush1.bf16.msra.mxu0 0
        %694 = vmatprep.subr.bf16.mxu0 0
        %695 = vmatpush1.bf16.msra.mxu0 0
        %696 = vmatprep.subr.bf16.mxu0 0
        %697 = vmatpush1.bf16.msra.mxu0 0
        %698 = vmatprep.subr.bf16.mxu0 0
        %699 = vmatpush1.bf16.msra.mxu0 0
        %700 = vmatprep.subr.bf16.mxu0 0
        %701 = vmatpush1.bf16.msra.mxu0 0
        %702 = vmatprep.subr.bf16.mxu0 0
        %703 = vmatpush1.bf16.msra.mxu0 0
        %704 = vmatprep.subr.bf16.mxu0 0
        %705 = vmatpush1.bf16.msra.mxu0 0
        %706 = vmatprep.subr.bf16.mxu0 0
        %707 = vmatpush1.bf16.msra.mxu0 0
        %708 = vmatprep.subr.bf16.mxu0 0
        %709 = vmatpush1.bf16.msra.mxu0 0
        %710 = vmatprep.subr.bf16.mxu0 0
        %711 = vmatpush1.bf16.msra.mxu0 0
        %712 = vmatprep.subr.bf16.mxu0 0
        %713 = vmatpush1.bf16.msra.mxu0 0
        %714 = vmatprep.subr.bf16.mxu0 0
        %715 = vmatpush1.bf16.msra.mxu0 0
        %716 = vmatprep.mubr.bf16.mxu0 0
        %717 = vmatmul.mubr.bf16.gmra.mrb[0].mxu0 %v670
        %v718 = vpop.f32.mrb[0].mxu0
        %v719 = vadd.f32 0.0, %v718
        %v720 = vpop.f32.mrb[0].mxu0
        %v721 = vpop.f32.mrb[0].mxu0
        %v722 = vadd.f32 0.0, %v721
        %v723 = vpop.f32.mrb[0].mxu0
        %724 = vmatprep.mubr.bf16.mxu0 0
        %725 = vmatmul.mubr.bf16.gmra.mrb[0].mxu0 %v673
        %v726 = vpop.f32.mrb[0].mxu0
        %v727 = vadd.f32 0.0, %v726
        %v728 = vpop.f32.mrb[0].mxu0
        %v729 = vpop.f32.mrb[0].mxu0
        %v730 = vadd.f32 0.0, %v729
        %v731 = vpop.f32.mrb[0].mxu0
        %732 = vmatprep.mubr.bf16.mxu0 0
        %733 = vmatmul.mubr.bf16.gmra.mrb[0].mxu0 %v676
        %v734 = vpop.f32.mrb[0].mxu0
        %v735 = vadd.f32 0.0, %v734
        %v736 = vpop.f32.mrb[0].mxu0
        %v737 = vpop.f32.mrb[0].mxu0
        %v738 = vadd.f32 0.0, %v737
        %v739 = vpop.f32.mrb[0].mxu0
        %740 = vmatprep.mubr.bf16.mxu0 0
        %741 = vmatmul.mubr.bf16.gmra.mrb[0].mxu0 %v679
        %v742 = vpop.f32.mrb[0].mxu0
        %v743 = vadd.f32 0.0, %v742
        %v744 = vpop.f32.mrb[0].mxu0
        %v745 = vpop.f32.mrb[0].mxu0
        %v746 = vadd.f32 0.0, %v745
        %v747 = vpop.f32.mrb[0].mxu0
        %748 = vdwg.mxu0
        %v749 = vadd.f32 %v624, %v719
        %v750 = vadd.f32 %v625, %v722
        %v751 = vadd.f32 %v626, %v727
        %v752 = vadd.f32 %v627, %v730
        %v753 = vadd.f32 %v628, %v735
        %v754 = vadd.f32 %v629, %v738
        %v755 = vadd.f32 %v630, %v743
        %v756 = vadd.f32 %v631, %v746
        %v758 = vshrl.u32 %v636, 16
        %v760 = vrot.slane %v758, 4
        %v761 = vshll.u32 %v636, 16
        %v763 = vrot.slane %v761, 5
        %v764 = vor.u32 %v760, %v763
        %v765 = vrot.slane %v764, 4
        %v767 = vshll.u32 %v637, 16
        %v769 = vrot.slane %v767, 5
        %v770 = vsel %vm204, %v765, %v769
        %v771 = vshrl.u32 %v637, 16
        %v773 = vrot.slane %v771, 4
        %v774 = vor.u32 %v773, %v769
        %v775 = vrot.slane %v774, 4
        %v777 = vshll.u32 %v638, 16
        %v779 = vrot.slane %v777, 5
        %v780 = vsel %vm204, %v775, %v779
        %v782 = vshrl.u32 %v639, 16
        %v784 = vrot.slane %v782, 4
        %v785 = vshll.u32 %v639, 16
        %v787 = vrot.slane %v785, 5
        %v788 = vor.u32 %v784, %v787
        %v789 = vrot.slane %v788, 4
        %v791 = vshll.u32 %v640, 16
        %v793 = vrot.slane %v791, 5
        %v794 = vsel %vm204, %v789, %v793
        %v795 = vshrl.u32 %v640, 16
        %v797 = vrot.slane %v795, 4
        %v798 = vor.u32 %v797, %v793
        %v799 = vrot.slane %v798, 4
        %v801 = vshll.u32 %v641, 16
        %v803 = vrot.slane %v801, 5
        %v804 = vsel %vm204, %v799, %v803
        %v806 = vshrl.u32 %v642, 16
        %v808 = vrot.slane %v806, 4
        %v809 = vshll.u32 %v642, 16
        %v811 = vrot.slane %v809, 5
        %v812 = vor.u32 %v808, %v811
        %v813 = vrot.slane %v812, 4
        %v815 = vshll.u32 %v643, 16
        %v817 = vrot.slane %v815, 5
        %v818 = vsel %vm204, %v813, %v817
        %v819 = vshrl.u32 %v643, 16
        %v821 = vrot.slane %v819, 4
        %v822 = vor.u32 %v821, %v817
        %v823 = vrot.slane %v822, 4
        %v825 = vshll.u32 %v644, 16
        %v827 = vrot.slane %v825, 5
        %v828 = vsel %vm204, %v823, %v827
        %v830 = vshrl.u32 %v645, 16
        %v832 = vrot.slane %v830, 4
        %v833 = vshll.u32 %v645, 16
        %v835 = vrot.slane %v833, 5
        %v836 = vor.u32 %v832, %v835
        %v837 = vrot.slane %v836, 4
        %v839 = vshll.u32 %v646, 16
        %v841 = vrot.slane %v839, 5
        %v842 = vsel %vm204, %v837, %v841
        %v843 = vshrl.u32 %v646, 16
        %v845 = vrot.slane %v843, 4
        %v846 = vor.u32 %v845, %v841
        %v847 = vrot.slane %v846, 4
        %v849 = vshll.u32 %v647, 16
        %v851 = vrot.slane %v849, 5
        %v852 = vsel %vm204, %v847, %v851
        %v853 = vld [vmem:[%s1 + $0x10] sm:$0xf]
        %v854 = vunpack.c.l.b16 %v770
        %v855 = vunpack.c.l.b16 %v780
        %v856 = vunpack.c.l.b16 %v794
        %v857 = vunpack.c.l.b16 %v804
        %v858 = vunpack.c.l.b16 %v818
        %v859 = vunpack.c.l.b16 %v828
        %v860 = vunpack.c.l.b16 %v842
        %v861 = vunpack.c.l.b16 %v852
        %v862 = vpack.c.b16 %v855, %v854
        %v863 = vpack.c.b16 %v857, %v856
        %v864 = vpack.c.b16 %v859, %v858
        %v865 = vpack.c.b16 %v861, %v860
        %v867 = vsel %vm314, %v862, 0
        %v870 = vsel %vm314, %v863, 0
        %v873 = vsel %vm314, %v864, 0
        %v876 = vsel %vm314, %v865, 0
        %v879 = vsel %vm327, %v853, 0
        %881 = vmatprep.subr.bf16.mxu0 0
        %882 = vmatpush1.bf16.msra.mxu0 %v879
        %883 = vmatprep.subr.bf16.mxu0 0
        %884 = vmatpush1.bf16.msra.mxu0 0
        %885 = vmatprep.subr.bf16.mxu0 0
        %886 = vmatpush1.bf16.msra.mxu0 0
        %887 = vmatprep.subr.bf16.mxu0 0
        %888 = vmatpush1.bf16.msra.mxu0 0
        %889 = vmatprep.subr.bf16.mxu0 0
        %890 = vmatpush1.bf16.msra.mxu0 0
        %891 = vmatprep.subr.bf16.mxu0 0
        %892 = vmatpush1.bf16.msra.mxu0 0
        %893 = vmatprep.subr.bf16.mxu0 0
        %894 = vmatpush1.bf16.msra.mxu0 0
        %895 = vmatprep.subr.bf16.mxu0 0
        %896 = vmatpush1.bf16.msra.mxu0 0
        %897 = vmatprep.subr.bf16.mxu0 0
        %898 = vmatpush1.bf16.msra.mxu0 0
        %899 = vmatprep.subr.bf16.mxu0 0
        %900 = vmatpush1.bf16.msra.mxu0 0
        %901 = vmatprep.subr.bf16.mxu0 0
        %902 = vmatpush1.bf16.msra.mxu0 0
        %903 = vmatprep.subr.bf16.mxu0 0
        %904 = vmatpush1.bf16.msra.mxu0 0
        %905 = vmatprep.subr.bf16.mxu0 0
        %906 = vmatpush1.bf16.msra.mxu0 0
        %907 = vmatprep.subr.bf16.mxu0 0
        %908 = vmatpush1.bf16.msra.mxu0 0
        %909 = vmatprep.subr.bf16.mxu0 0
        %910 = vmatpush1.bf16.msra.mxu0 0
        %911 = vmatprep.subr.bf16.mxu0 0
        %912 = vmatpush1.bf16.msra.mxu0 0
        %913 = vmatprep.mubr.bf16.mxu0 0
        %914 = vmatmul.mubr.bf16.gmra.mrb[0].mxu0 %v867
        %v915 = vpop.f32.mrb[0].mxu0
        %v916 = vadd.f32 0.0, %v915
        %v917 = vpop.f32.mrb[0].mxu0
        %v918 = vpop.f32.mrb[0].mxu0
        %v919 = vadd.f32 0.0, %v918
        %v920 = vpop.f32.mrb[0].mxu0
        %921 = vmatprep.mubr.bf16.mxu0 0
        %922 = vmatmul.mubr.bf16.gmra.mrb[0].mxu0 %v870
        %v923 = vpop.f32.mrb[0].mxu0
        %v924 = vadd.f32 0.0, %v923
        %v925 = vpop.f32.mrb[0].mxu0
        %v926 = vpop.f32.mrb[0].mxu0
        %v927 = vadd.f32 0.0, %v926
        %v928 = vpop.f32.mrb[0].mxu0
        %929 = vmatprep.mubr.bf16.mxu0 0
        %930 = vmatmul.mubr.bf16.gmra.mrb[0].mxu0 %v873
        %v931 = vpop.f32.mrb[0].mxu0
        %v932 = vadd.f32 0.0, %v931
        %v933 = vpop.f32.mrb[0].mxu0
        %v934 = vpop.f32.mrb[0].mxu0
        %v935 = vadd.f32 0.0, %v934
        %v936 = vpop.f32.mrb[0].mxu0
        %937 = vmatprep.mubr.bf16.mxu0 0
        %938 = vmatmul.mubr.bf16.gmra.mrb[0].mxu0 %v876
        %v939 = vpop.f32.mrb[0].mxu0
        %v940 = vadd.f32 0.0, %v939
        %v941 = vpop.f32.mrb[0].mxu0
        %v942 = vpop.f32.mrb[0].mxu0
        %v943 = vadd.f32 0.0, %v942
        %v944 = vpop.f32.mrb[0].mxu0
        %945 = vdwg.mxu0
        %v946 = vadd.f32 %v749, %v916
        %v947 = vadd.f32 %v750, %v919
        %v948 = vadd.f32 %v751, %v924
        %v949 = vadd.f32 %v752, %v927
        %v950 = vadd.f32 %v753, %v932
        %v951 = vadd.f32 %v754, %v935
        %v952 = vadd.f32 %v755, %v940
        %v953 = vadd.f32 %v756, %v943
        %v958 = vrot.slane %v636, 5
        %v959 = vrot.slane %v958, 4
        %v960 = vrot.slane %v637, 5
        %v961 = vsel %vm502, %v959, %v960
        %v962 = vrot.slane %v960, 4
        %v963 = vrot.slane %v638, 5
        %v964 = vsel %vm502, %v962, %v963
        %v965 = vrot.slane %v639, 5
        %v966 = vrot.slane %v965, 4
        %v967 = vrot.slane %v640, 5
        %v968 = vsel %vm502, %v966, %v967
        %v969 = vrot.slane %v967, 4
        %v970 = vrot.slane %v641, 5
        %v971 = vsel %vm502, %v969, %v970
        %v972 = vrot.slane %v642, 5
        %v973 = vrot.slane %v972, 4
        %v974 = vrot.slane %v643, 5
        %v975 = vsel %vm502, %v973, %v974
        %v976 = vrot.slane %v974, 4
        %v977 = vrot.slane %v644, 5
        %v978 = vsel %vm502, %v976, %v977
        %v979 = vrot.slane %v645, 5
        %v980 = vrot.slane %v979, 4
        %v981 = vrot.slane %v646, 5
        %v982 = vsel %vm502, %v980, %v981
        %v983 = vrot.slane %v981, 4
        %v984 = vrot.slane %v647, 5
        %v985 = vsel %vm502, %v983, %v984
        %v986 = vld [vmem:[%s1 + $0x14] sm:$0xf]
        %v987 = vunpack.c.l.b16 %v961
        %v988 = vunpack.c.l.b16 %v964
        %v989 = vunpack.c.l.b16 %v968
        %v990 = vunpack.c.l.b16 %v971
        %v991 = vunpack.c.l.b16 %v975
        %v992 = vunpack.c.l.b16 %v978
        %v993 = vunpack.c.l.b16 %v982
        %v994 = vunpack.c.l.b16 %v985
        %v995 = vpack.c.b16 %v988, %v987
        %v996 = vpack.c.b16 %v990, %v989
        %v997 = vpack.c.b16 %v992, %v991
        %v998 = vpack.c.b16 %v994, %v993
        %v1000 = vsel %vm314, %v995, 0
        %v1003 = vsel %vm314, %v996, 0
        %v1006 = vsel %vm314, %v997, 0
        %v1009 = vsel %vm314, %v998, 0
        %v1012 = vsel %vm327, %v986, 0
        %1014 = vmatprep.subr.bf16.mxu0 0
        %1015 = vmatpush1.bf16.msra.mxu0 %v1012
        %1016 = vmatprep.subr.bf16.mxu0 0
        %1017 = vmatpush1.bf16.msra.mxu0 0
        %1018 = vmatprep.subr.bf16.mxu0 0
        %1019 = vmatpush1.bf16.msra.mxu0 0
        %1020 = vmatprep.subr.bf16.mxu0 0
        %1021 = vmatpush1.bf16.msra.mxu0 0
        %1022 = vmatprep.subr.bf16.mxu0 0
        %1023 = vmatpush1.bf16.msra.mxu0 0
        %1024 = vmatprep.subr.bf16.mxu0 0
        %1025 = vmatpush1.bf16.msra.mxu0 0
        %1026 = vmatprep.subr.bf16.mxu0 0
        %1027 = vmatpush1.bf16.msra.mxu0 0
        %1028 = vmatprep.subr.bf16.mxu0 0
        %1029 = vmatpush1.bf16.msra.mxu0 0
        %1030 = vmatprep.subr.bf16.mxu0 0
        %1031 = vmatpush1.bf16.msra.mxu0 0
        %1032 = vmatprep.subr.bf16.mxu0 0
        %1033 = vmatpush1.bf16.msra.mxu0 0
        %1034 = vmatprep.subr.bf16.mxu0 0
        %1035 = vmatpush1.bf16.msra.mxu0 0
        %1036 = vmatprep.subr.bf16.mxu0 0
        %1037 = vmatpush1.bf16.msra.mxu0 0
        %1038 = vmatprep.subr.bf16.mxu0 0
        %1039 = vmatpush1.bf16.msra.mxu0 0
        %1040 = vmatprep.subr.bf16.mxu0 0
        %1041 = vmatpush1.bf16.msra.mxu0 0
        %1042 = vmatprep.subr.bf16.mxu0 0
        %1043 = vmatpush1.bf16.msra.mxu0 0
        %1044 = vmatprep.subr.bf16.mxu0 0
        %1045 = vmatpush1.bf16.msra.mxu0 0
        %1046 = vmatprep.mubr.bf16.mxu0 0
        %1047 = vmatmul.mubr.bf16.gmra.mrb[0].mxu0 %v1000
        %v1048 = vpop.f32.mrb[0].mxu0
        %v1049 = vadd.f32 0.0, %v1048
        %v1050 = vpop.f32.mrb[0].mxu0
        %v1051 = vpop.f32.mrb[0].mxu0
        %v1052 = vadd.f32 0.0, %v1051
        %v1053 = vpop.f32.mrb[0].mxu0
        %1054 = vmatprep.mubr.bf16.mxu0 0
        %1055 = vmatmul.mubr.bf16.gmra.mrb[0].mxu0 %v1003
        %v1056 = vpop.f32.mrb[0].mxu0
        %v1057 = vadd.f32 0.0, %v1056
        %v1058 = vpop.f32.mrb[0].mxu0
        %v1059 = vpop.f32.mrb[0].mxu0
        %v1060 = vadd.f32 0.0, %v1059
        %v1061 = vpop.f32.mrb[0].mxu0
        %1062 = vmatprep.mubr.bf16.mxu0 0
        %1063 = vmatmul.mubr.bf16.gmra.mrb[0].mxu0 %v1006
        %v1064 = vpop.f32.mrb[0].mxu0
        %v1065 = vadd.f32 0.0, %v1064
        %v1066 = vpop.f32.mrb[0].mxu0
        %v1067 = vpop.f32.mrb[0].mxu0
        %v1068 = vadd.f32 0.0, %v1067
        %v1069 = vpop.f32.mrb[0].mxu0
        %1070 = vmatprep.mubr.bf16.mxu0 0
        %1071 = vmatmul.mubr.bf16.gmra.mrb[0].mxu0 %v1009
        %v1072 = vpop.f32.mrb[0].mxu0
        %v1073 = vadd.f32 0.0, %v1072
        %v1074 = vpop.f32.mrb[0].mxu0
        %v1075 = vpop.f32.mrb[0].mxu0
        %v1076 = vadd.f32 0.0, %v1075
        %v1077 = vpop.f32.mrb[0].mxu0
        %1078 = vdwg.mxu0
        %v1079 = vadd.f32 %v946, %v1049
        %v1080 = vadd.f32 %v947, %v1052
        %v1081 = vadd.f32 %v948, %v1057
        %v1082 = vadd.f32 %v949, %v1060
        %v1083 = vadd.f32 %v950, %v1065
        %v1084 = vadd.f32 %v951, %v1068
        %v1085 = vadd.f32 %v952, %v1073
        %v1086 = vadd.f32 %v953, %v1076
        %s1087 = sadd.s32 %s185, 2
        %s1088 = smul.u32 %s1087, 3
        %s1089 = smul.addr %s1088, 4
        %s1090 = scalar_lea.vmem %s182, %s1089
        %v1091 = vld [vmem:[%s1090] sm:$0xf]
        %v1092 = vld [vmem:[%s1090 + $0x4] sm:$0xf]
        %v1093 = vld [vmem:[%s1090 + $0x8] sm:$0x1]
        %v1094 = vld [vmem:[%s1090 + $0xc] sm:$0xf]
        %v1095 = vld [vmem:[%s1090 + $0x10] sm:$0xf]
        %v1096 = vld [vmem:[%s1090 + $0x14] sm:$0x1]
        %v1097 = vld [vmem:[%s1090 + $0x18] sm:$0xf]
        %v1098 = vld [vmem:[%s1090 + $0x1c] sm:$0xf]
        %v1099 = vld [vmem:[%s1090 + $0x20] sm:$0x1]
        %v1100 = vld [vmem:[%s1090 + $0x24] sm:$0xf]
        %v1101 = vld [vmem:[%s1090 + $0x28] sm:$0xf]
        %v1102 = vld [vmem:[%s1090 + $0x2c] sm:$0x1]
        %v1103 = vld [vmem:[%s1 + $0x18] sm:$0xf]
        %v1112 = vunpack.c.l.b16 %v1091
        %v1113 = vunpack.c.l.b16 %v1092
        %v1114 = vunpack.c.l.b16 %v1094
        %v1115 = vunpack.c.l.b16 %v1095
        %v1116 = vunpack.c.l.b16 %v1097
        %v1117 = vunpack.c.l.b16 %v1098
        %v1118 = vunpack.c.l.b16 %v1100
        %v1119 = vunpack.c.l.b16 %v1101
        %v1120 = vpack.c.b16 %v1113, %v1112
        %v1121 = vpack.c.b16 %v1115, %v1114
        %v1122 = vpack.c.b16 %v1117, %v1116
        %v1123 = vpack.c.b16 %v1119, %v1118
        %v1125 = vsel %vm314, %v1120, 0
        %v1128 = vsel %vm314, %v1121, 0
        %v1131 = vsel %vm314, %v1122, 0
        %v1134 = vsel %vm314, %v1123, 0
        %v1137 = vsel %vm327, %v1103, 0
        %1139 = vmatprep.subr.bf16.mxu0 0
        %1140 = vmatpush1.bf16.msra.mxu0 %v1137
        %1141 = vmatprep.subr.bf16.mxu0 0
        %1142 = vmatpush1.bf16.msra.mxu0 0
        %1143 = vmatprep.subr.bf16.mxu0 0
        %1144 = vmatpush1.bf16.msra.mxu0 0
        %1145 = vmatprep.subr.bf16.mxu0 0
        %1146 = vmatpush1.bf16.msra.mxu0 0
        %1147 = vmatprep.subr.bf16.mxu0 0
        %1148 = vmatpush1.bf16.msra.mxu0 0
        %1149 = vmatprep.subr.bf16.mxu0 0
        %1150 = vmatpush1.bf16.msra.mxu0 0
        %1151 = vmatprep.subr.bf16.mxu0 0
        %1152 = vmatpush1.bf16.msra.mxu0 0
        %1153 = vmatprep.subr.bf16.mxu0 0
        %1154 = vmatpush1.bf16.msra.mxu0 0
        %1155 = vmatprep.subr.bf16.mxu0 0
        %1156 = vmatpush1.bf16.msra.mxu0 0
        %1157 = vmatprep.subr.bf16.mxu0 0
        %1158 = vmatpush1.bf16.msra.mxu0 0
        %1159 = vmatprep.subr.bf16.mxu0 0
        %1160 = vmatpush1.bf16.msra.mxu0 0
        %1161 = vmatprep.subr.bf16.mxu0 0
        %1162 = vmatpush1.bf16.msra.mxu0 0
        %1163 = vmatprep.subr.bf16.mxu0 0
        %1164 = vmatpush1.bf16.msra.mxu0 0
        %1165 = vmatprep.subr.bf16.mxu0 0
        %1166 = vmatpush1.bf16.msra.mxu0 0
        %1167 = vmatprep.subr.bf16.mxu0 0
        %1168 = vmatpush1.bf16.msra.mxu0 0
        %1169 = vmatprep.subr.bf16.mxu0 0
        %1170 = vmatpush1.bf16.msra.mxu0 0
        %1171 = vmatprep.mubr.bf16.mxu0 0
        %1172 = vmatmul.mubr.bf16.gmra.mrb[0].mxu0 %v1125
        %v1173 = vpop.f32.mrb[0].mxu0
        %v1174 = vadd.f32 0.0, %v1173
        %v1175 = vpop.f32.mrb[0].mxu0
        %v1176 = vpop.f32.mrb[0].mxu0
        %v1177 = vadd.f32 0.0, %v1176
        %v1178 = vpop.f32.mrb[0].mxu0
        %1179 = vmatprep.mubr.bf16.mxu0 0
        %1180 = vmatmul.mubr.bf16.gmra.mrb[0].mxu0 %v1128
        %v1181 = vpop.f32.mrb[0].mxu0
        %v1182 = vadd.f32 0.0, %v1181
        %v1183 = vpop.f32.mrb[0].mxu0
        %v1184 = vpop.f32.mrb[0].mxu0
        %v1185 = vadd.f32 0.0, %v1184
        %v1186 = vpop.f32.mrb[0].mxu0
        %1187 = vmatprep.mubr.bf16.mxu0 0
        %1188 = vmatmul.mubr.bf16.gmra.mrb[0].mxu0 %v1131
        %v1189 = vpop.f32.mrb[0].mxu0
        %v1190 = vadd.f32 0.0, %v1189
        %v1191 = vpop.f32.mrb[0].mxu0
        %v1192 = vpop.f32.mrb[0].mxu0
        %v1193 = vadd.f32 0.0, %v1192
        %v1194 = vpop.f32.mrb[0].mxu0
        %1195 = vmatprep.mubr.bf16.mxu0 0
        %1196 = vmatmul.mubr.bf16.gmra.mrb[0].mxu0 %v1134
        %v1197 = vpop.f32.mrb[0].mxu0
        %v1198 = vadd.f32 0.0, %v1197
        %v1199 = vpop.f32.mrb[0].mxu0
        %v1200 = vpop.f32.mrb[0].mxu0
        %v1201 = vadd.f32 0.0, %v1200
        %v1202 = vpop.f32.mrb[0].mxu0
        %1203 = vdwg.mxu0
        %v1204 = vadd.f32 %v1079, %v1174
        %v1205 = vadd.f32 %v1080, %v1177
        %v1206 = vadd.f32 %v1081, %v1182
        %v1207 = vadd.f32 %v1082, %v1185
        %v1208 = vadd.f32 %v1083, %v1190
        %v1209 = vadd.f32 %v1084, %v1193
        %v1210 = vadd.f32 %v1085, %v1198
        %v1211 = vadd.f32 %v1086, %v1201
        %v1213 = vshrl.u32 %v1091, 16
        %v1215 = vrot.slane %v1213, 4
        %v1216 = vshll.u32 %v1091, 16
        %v1218 = vrot.slane %v1216, 5
        %v1219 = vor.u32 %v1215, %v1218
        %v1220 = vrot.slane %v1219, 4
        %v1222 = vshll.u32 %v1092, 16
        %v1224 = vrot.slane %v1222, 5
        %v1225 = vsel %vm204, %v1220, %v1224
        %v1226 = vshrl.u32 %v1092, 16
        %v1228 = vrot.slane %v1226, 4
        %v1229 = vor.u32 %v1228, %v1224
        %v1230 = vrot.slane %v1229, 4
        %v1232 = vshll.u32 %v1093, 16
        %v1234 = vrot.slane %v1232, 5
        %v1235 = vsel %vm204, %v1230, %v1234
        %v1237 = vshrl.u32 %v1094, 16
        %v1239 = vrot.slane %v1237, 4
        %v1240 = vshll.u32 %v1094, 16
        %v1242 = vrot.slane %v1240, 5
        %v1243 = vor.u32 %v1239, %v1242
        %v1244 = vrot.slane %v1243, 4
        %v1246 = vshll.u32 %v1095, 16
        %v1248 = vrot.slane %v1246, 5
        %v1249 = vsel %vm204, %v1244, %v1248
        %v1250 = vshrl.u32 %v1095, 16
        %v1252 = vrot.slane %v1250, 4
        %v1253 = vor.u32 %v1252, %v1248
        %v1254 = vrot.slane %v1253, 4
        %v1256 = vshll.u32 %v1096, 16
        %v1258 = vrot.slane %v1256, 5
        %v1259 = vsel %vm204, %v1254, %v1258
        %v1261 = vshrl.u32 %v1097, 16
        %v1263 = vrot.slane %v1261, 4
        %v1264 = vshll.u32 %v1097, 16
        %v1266 = vrot.slane %v1264, 5
        %v1267 = vor.u32 %v1263, %v1266
        %v1268 = vrot.slane %v1267, 4
        %v1270 = vshll.u32 %v1098, 16
        %v1272 = vrot.slane %v1270, 5
        %v1273 = vsel %vm204, %v1268, %v1272
        %v1274 = vshrl.u32 %v1098, 16
        %v1276 = vrot.slane %v1274, 4
        %v1277 = vor.u32 %v1276, %v1272
        %v1278 = vrot.slane %v1277, 4
        %v1280 = vshll.u32 %v1099, 16
        %v1282 = vrot.slane %v1280, 5
        %v1283 = vsel %vm204, %v1278, %v1282
        %v1285 = vshrl.u32 %v1100, 16
        %v1287 = vrot.slane %v1285, 4
        %v1288 = vshll.u32 %v1100, 16
        %v1290 = vrot.slane %v1288, 5
        %v1291 = vor.u32 %v1287, %v1290
        %v1292 = vrot.slane %v1291, 4
        %v1294 = vshll.u32 %v1101, 16
        %v1296 = vrot.slane %v1294, 5
        %v1297 = vsel %vm204, %v1292, %v1296
        %v1298 = vshrl.u32 %v1101, 16
        %v1300 = vrot.slane %v1298, 4
        %v1301 = vor.u32 %v1300, %v1296
        %v1302 = vrot.slane %v1301, 4
        %v1304 = vshll.u32 %v1102, 16
        %v1306 = vrot.slane %v1304, 5
        %v1307 = vsel %vm204, %v1302, %v1306
        %v1308 = vld [vmem:[%s1 + $0x1c] sm:$0xf]
        %v1309 = vunpack.c.l.b16 %v1225
        %v1310 = vunpack.c.l.b16 %v1235
        %v1311 = vunpack.c.l.b16 %v1249
        %v1312 = vunpack.c.l.b16 %v1259
        %v1313 = vunpack.c.l.b16 %v1273
        %v1314 = vunpack.c.l.b16 %v1283
        %v1315 = vunpack.c.l.b16 %v1297
        %v1316 = vunpack.c.l.b16 %v1307
        %v1317 = vpack.c.b16 %v1310, %v1309
        %v1318 = vpack.c.b16 %v1312, %v1311
        %v1319 = vpack.c.b16 %v1314, %v1313
        %v1320 = vpack.c.b16 %v1316, %v1315
        %v1322 = vsel %vm314, %v1317, 0
        %v1325 = vsel %vm314, %v1318, 0
        %v1328 = vsel %vm314, %v1319, 0
        %v1331 = vsel %vm314, %v1320, 0
        %v1334 = vsel %vm327, %v1308, 0
        %1336 = vmatprep.subr.bf16.mxu0 0
        %1337 = vmatpush1.bf16.msra.mxu0 %v1334
        %1338 = vmatprep.subr.bf16.mxu0 0
        %1339 = vmatpush1.bf16.msra.mxu0 0
        %1340 = vmatprep.subr.bf16.mxu0 0
        %1341 = vmatpush1.bf16.msra.mxu0 0
        %1342 = vmatprep.subr.bf16.mxu0 0
        %1343 = vmatpush1.bf16.msra.mxu0 0
        %1344 = vmatprep.subr.bf16.mxu0 0
        %1345 = vmatpush1.bf16.msra.mxu0 0
        %1346 = vmatprep.subr.bf16.mxu0 0
        %1347 = vmatpush1.bf16.msra.mxu0 0
        %1348 = vmatprep.subr.bf16.mxu0 0
        %1349 = vmatpush1.bf16.msra.mxu0 0
        %1350 = vmatprep.subr.bf16.mxu0 0
        %1351 = vmatpush1.bf16.msra.mxu0 0
        %1352 = vmatprep.subr.bf16.mxu0 0
        %1353 = vmatpush1.bf16.msra.mxu0 0
        %1354 = vmatprep.subr.bf16.mxu0 0
        %1355 = vmatpush1.bf16.msra.mxu0 0
        %1356 = vmatprep.subr.bf16.mxu0 0
        %1357 = vmatpush1.bf16.msra.mxu0 0
        %1358 = vmatprep.subr.bf16.mxu0 0
        %1359 = vmatpush1.bf16.msra.mxu0 0
        %1360 = vmatprep.subr.bf16.mxu0 0
        %1361 = vmatpush1.bf16.msra.mxu0 0
        %1362 = vmatprep.subr.bf16.mxu0 0
        %1363 = vmatpush1.bf16.msra.mxu0 0
        %1364 = vmatprep.subr.bf16.mxu0 0
        %1365 = vmatpush1.bf16.msra.mxu0 0
        %1366 = vmatprep.subr.bf16.mxu0 0
        %1367 = vmatpush1.bf16.msra.mxu0 0
        %1368 = vmatprep.mubr.bf16.mxu0 0
        %1369 = vmatmul.mubr.bf16.gmra.mrb[0].mxu0 %v1322
        %v1370 = vpop.f32.mrb[0].mxu0
        %v1371 = vadd.f32 0.0, %v1370
        %v1372 = vpop.f32.mrb[0].mxu0
        %v1373 = vpop.f32.mrb[0].mxu0
        %v1374 = vadd.f32 0.0, %v1373
        %v1375 = vpop.f32.mrb[0].mxu0
        %1376 = vmatprep.mubr.bf16.mxu0 0
        %1377 = vmatmul.mubr.bf16.gmra.mrb[0].mxu0 %v1325
        %v1378 = vpop.f32.mrb[0].mxu0
        %v1379 = vadd.f32 0.0, %v1378
        %v1380 = vpop.f32.mrb[0].mxu0
        %v1381 = vpop.f32.mrb[0].mxu0
        %v1382 = vadd.f32 0.0, %v1381
        %v1383 = vpop.f32.mrb[0].mxu0
        %1384 = vmatprep.mubr.bf16.mxu0 0
        %1385 = vmatmul.mubr.bf16.gmra.mrb[0].mxu0 %v1328
        %v1386 = vpop.f32.mrb[0].mxu0
        %v1387 = vadd.f32 0.0, %v1386
        %v1388 = vpop.f32.mrb[0].mxu0
        %v1389 = vpop.f32.mrb[0].mxu0
        %v1390 = vadd.f32 0.0, %v1389
        %v1391 = vpop.f32.mrb[0].mxu0
        %1392 = vmatprep.mubr.bf16.mxu0 0
        %1393 = vmatmul.mubr.bf16.gmra.mrb[0].mxu0 %v1331
        %v1394 = vpop.f32.mrb[0].mxu0
        %v1395 = vadd.f32 0.0, %v1394
        %v1396 = vpop.f32.mrb[0].mxu0
        %v1397 = vpop.f32.mrb[0].mxu0
        %v1398 = vadd.f32 0.0, %v1397
        %v1399 = vpop.f32.mrb[0].mxu0
        %1400 = vdwg.mxu0
        %v1401 = vadd.f32 %v1204, %v1371
        %v1402 = vadd.f32 %v1205, %v1374
        %v1403 = vadd.f32 %v1206, %v1379
        %v1404 = vadd.f32 %v1207, %v1382
        %v1405 = vadd.f32 %v1208, %v1387
        %v1406 = vadd.f32 %v1209, %v1390
        %v1407 = vadd.f32 %v1210, %v1395
        %v1408 = vadd.f32 %v1211, %v1398
        %v1413 = vrot.slane %v1091, 5
        %v1414 = vrot.slane %v1413, 4
        %v1415 = vrot.slane %v1092, 5
        %v1416 = vsel %vm502, %v1414, %v1415
        %v1417 = vrot.slane %v1415, 4
        %v1418 = vrot.slane %v1093, 5
        %v1419 = vsel %vm502, %v1417, %v1418
        %v1420 = vrot.slane %v1094, 5
        %v1421 = vrot.slane %v1420, 4
        %v1422 = vrot.slane %v1095, 5
        %v1423 = vsel %vm502, %v1421, %v1422
        %v1424 = vrot.slane %v1422, 4
        %v1425 = vrot.slane %v1096, 5
        %v1426 = vsel %vm502, %v1424, %v1425
        %v1427 = vrot.slane %v1097, 5
        %v1428 = vrot.slane %v1427, 4
        %v1429 = vrot.slane %v1098, 5
        %v1430 = vsel %vm502, %v1428, %v1429
        %v1431 = vrot.slane %v1429, 4
        %v1432 = vrot.slane %v1099, 5
        %v1433 = vsel %vm502, %v1431, %v1432
        %v1434 = vrot.slane %v1100, 5
        %v1435 = vrot.slane %v1434, 4
        %v1436 = vrot.slane %v1101, 5
        %v1437 = vsel %vm502, %v1435, %v1436
        %v1438 = vrot.slane %v1436, 4
        %v1439 = vrot.slane %v1102, 5
        %v1440 = vsel %vm502, %v1438, %v1439
        %v1441 = vld [vmem:[%s1 + $0x20] sm:$0xf]
        %v1442 = vunpack.c.l.b16 %v1416
        %v1443 = vunpack.c.l.b16 %v1419
        %v1444 = vunpack.c.l.b16 %v1423
        %v1445 = vunpack.c.l.b16 %v1426
        %v1446 = vunpack.c.l.b16 %v1430
        %v1447 = vunpack.c.l.b16 %v1433
        %v1448 = vunpack.c.l.b16 %v1437
        %v1449 = vunpack.c.l.b16 %v1440
        %v1450 = vpack.c.b16 %v1443, %v1442
        %v1451 = vpack.c.b16 %v1445, %v1444
        %v1452 = vpack.c.b16 %v1447, %v1446
        %v1453 = vpack.c.b16 %v1449, %v1448
        %v1455 = vsel %vm314, %v1450, 0
        %v1458 = vsel %vm314, %v1451, 0
        %v1461 = vsel %vm314, %v1452, 0
        %v1464 = vsel %vm314, %v1453, 0
        %v1467 = vsel %vm327, %v1441, 0
        %1469 = vmatprep.subr.bf16.mxu0 0
        %1470 = vmatpush1.bf16.msra.mxu0 %v1467
        %1471 = vmatprep.subr.bf16.mxu0 0
        %1472 = vmatpush1.bf16.msra.mxu0 0
        %1473 = vmatprep.subr.bf16.mxu0 0
        %1474 = vmatpush1.bf16.msra.mxu0 0
        %1475 = vmatprep.subr.bf16.mxu0 0
        %1476 = vmatpush1.bf16.msra.mxu0 0
        %1477 = vmatprep.subr.bf16.mxu0 0
        %1478 = vmatpush1.bf16.msra.mxu0 0
        %1479 = vmatprep.subr.bf16.mxu0 0
        %1480 = vmatpush1.bf16.msra.mxu0 0
        %1481 = vmatprep.subr.bf16.mxu0 0
        %1482 = vmatpush1.bf16.msra.mxu0 0
        %1483 = vmatprep.subr.bf16.mxu0 0
        %1484 = vmatpush1.bf16.msra.mxu0 0
        %1485 = vmatprep.subr.bf16.mxu0 0
        %1486 = vmatpush1.bf16.msra.mxu0 0
        %1487 = vmatprep.subr.bf16.mxu0 0
        %1488 = vmatpush1.bf16.msra.mxu0 0
        %1489 = vmatprep.subr.bf16.mxu0 0
        %1490 = vmatpush1.bf16.msra.mxu0 0
        %1491 = vmatprep.subr.bf16.mxu0 0
        %1492 = vmatpush1.bf16.msra.mxu0 0
        %1493 = vmatprep.subr.bf16.mxu0 0
        %1494 = vmatpush1.bf16.msra.mxu0 0
        %1495 = vmatprep.subr.bf16.mxu0 0
        %1496 = vmatpush1.bf16.msra.mxu0 0
        %1497 = vmatprep.subr.bf16.mxu0 0
        %1498 = vmatpush1.bf16.msra.mxu0 0
        %1499 = vmatprep.subr.bf16.mxu0 0
        %1500 = vmatpush1.bf16.msra.mxu0 0
        %1501 = vmatprep.mubr.bf16.mxu0 0
        %1502 = vmatmul.mubr.bf16.gmra.mrb[0].mxu0 %v1455
        %v1503 = vpop.f32.mrb[0].mxu0
        %v1504 = vadd.f32 0.0, %v1503
        %v1505 = vpop.f32.mrb[0].mxu0
        %v1506 = vpop.f32.mrb[0].mxu0
        %v1507 = vadd.f32 0.0, %v1506
        %v1508 = vpop.f32.mrb[0].mxu0
        %1509 = vmatprep.mubr.bf16.mxu0 0
        %1510 = vmatmul.mubr.bf16.gmra.mrb[0].mxu0 %v1458
        %v1511 = vpop.f32.mrb[0].mxu0
        %v1512 = vadd.f32 0.0, %v1511
        %v1513 = vpop.f32.mrb[0].mxu0
        %v1514 = vpop.f32.mrb[0].mxu0
        %v1515 = vadd.f32 0.0, %v1514
        %v1516 = vpop.f32.mrb[0].mxu0
        %1517 = vmatprep.mubr.bf16.mxu0 0
        %1518 = vmatmul.mubr.bf16.gmra.mrb[0].mxu0 %v1461
        %v1519 = vpop.f32.mrb[0].mxu0
        %v1520 = vadd.f32 0.0, %v1519
        %v1521 = vpop.f32.mrb[0].mxu0
        %v1522 = vpop.f32.mrb[0].mxu0
        %v1523 = vadd.f32 0.0, %v1522
        %v1524 = vpop.f32.mrb[0].mxu0
        %1525 = vmatprep.mubr.bf16.mxu0 0
        %1526 = vmatmul.mubr.bf16.gmra.mrb[0].mxu0 %v1464
        %v1527 = vpop.f32.mrb[0].mxu0
        %v1528 = vadd.f32 0.0, %v1527
        %v1529 = vpop.f32.mrb[0].mxu0
        %v1530 = vpop.f32.mrb[0].mxu0
        %v1531 = vadd.f32 0.0, %v1530
        %v1532 = vpop.f32.mrb[0].mxu0
        %1533 = vdwg.mxu0
        %v1534 = vadd.f32 %v1401, %v1504
        %v1535 = vadd.f32 %v1402, %v1507
        %v1536 = vadd.f32 %v1403, %v1512
        %v1537 = vadd.f32 %v1404, %v1515
        %v1538 = vadd.f32 %v1405, %v1520
        %v1539 = vadd.f32 %v1406, %v1523
        %v1540 = vadd.f32 %v1407, %v1528
        %v1541 = vadd.f32 %v1408, %v1531
        %v1542 = vld [vmem:[%s2] sm:$0x1]
        %v1544 = vlaneseq
        %v1545 = vshrl.u32 %v1544, 7
        %v1546 = vsub.s32 0, %v1545
        %v1547 = vrot.slane %v1542, %v1546
        %v1549 = vadd.f32 %v1534, %v1547
        %v1550 = vadd.f32 %v1535, %v1547
        %v1551 = vadd.f32 %v1536, %v1547
        %v1552 = vadd.f32 %v1537, %v1547
        %v1553 = vadd.f32 %v1538, %v1547
        %v1554 = vadd.f32 %v1539, %v1547
        %v1555 = vadd.f32 %v1540, %v1547
        %v1556 = vadd.f32 %v1541, %v1547
        %vm1557 = vcmask 130048
        %1558 = vst.msk [vmem:[%s177] sm:$0xff] %vm1557, %v1549
        %1559 = vst.msk [vmem:[%s177 + $0x8] sm:$0xff] %vm1557, %v1550
        %1560 = vst.msk [vmem:[%s177 + $0x10] sm:$0xff] %vm1557, %v1551
        %1561 = vst.msk [vmem:[%s177 + $0x18] sm:$0xff] %vm1557, %v1552
        %1562 = vst.msk [vmem:[%s177 + $0x20] sm:$0xff] %vm1557, %v1553
        %1563 = vst.msk [vmem:[%s177 + $0x28] sm:$0xff] %vm1557, %v1554
        %1564 = vst.msk [vmem:[%s177 + $0x30] sm:$0xff] %vm1557, %v1555
        %1565 = vst.msk [vmem:[%s177 + $0x38] sm:$0xff] %vm1557, %v1556
        %s1566 = sand.u32 %s107, 1
        %s1567 = scalar_lea.sflag [#allocation3], %s1566
        %s1568 = sand.u32 %s107, 1
        %s1569 = smul.addr %s1568, 64
        %s1570 = scalar_lea.vmem [#allocation2], %s1569
        // Predicated region
        $region33: #{tpu_custom_call.1} parent=31 // pred_check
          %p1571 = pneg %p117
        $region34: #{tpu_custom_call.1} parent=31 // pred_check_branch
          %1573 = sbr.rel (%p1571) target = $region36
        $region35: #{tpu_custom_call.1} parent=31 // pred_region
          %s1574 = smul.u32 4, %s22
          %s1576 = ssub.s32 1024, 1024
          %1577 = vsyncadd %s1567, %s1576
          %s1578 = smul.addr %s1574, 2
          %s1579 = smul.addr %s21, 16
          %s1580 = sadd.s32 %s1578, %s1579
          %s1581 = smul.addr %s1580, 128
          %s1582 = scalar_lea.hbm %s3, %s1581
          %s1583 = sshll.u32 %s1570, 4
          %s1584 = int_to_ptr.vmem [resolvable:$true] %s1583
          %1589 = dma.vmem_to_hbm [thread:$0]  %s1584, 1024, %s1582, %s1567, 128, 128, 8
        $region36: #{tpu_custom_call.1} parent=31 // pred_fallthru
          _
      $region32: #{tpu_custom_call.1} parent=5 // pred_fallthru
        _
      %p1590 = scmp.le.s32.totalorder 2, %s12
      // Predicated region
      $region37: #{tpu_custom_call.1} parent=5 // pred_check
        %p1591 = pneg %p1590
      $region38: #{tpu_custom_call.1} parent=5 // pred_check_branch
        %1593 = sbr.rel (%p1591) target = $region40
      $region39: #{tpu_custom_call.1} parent=5 // pred_region
        %s1594 = ssub.s32 %s12, 2
        // Predicated region
        $region41: #{tpu_custom_call.1} parent=39 // pred_check
          %p1595 = pneg %p123
        $region42: #{tpu_custom_call.1} parent=39 // pred_check_branch
          %1597 = sbr.rel (%p1595) target = $region44
        $region43: #{tpu_custom_call.1} parent=39 // pred_region
          %s1598 = sand.u32 %s108, 1
          %s1599 = scalar_lea.sflag [#allocation3], %s1598
          %s1600 = sand.u32 %s108, 1
          %s1601 = smul.addr %s1600, 64
          %s1602 = scalar_lea.vmem [#allocation2], %s1601
          %1603 = dma.done %s1599, 1024
        $region44: #{tpu_custom_call.1} parent=39 // pred_fallthru
          _
      $region40: #{tpu_custom_call.1} parent=5 // pred_fallthru
        _
    $region6: #{tpu_custom_call.1} parent=1 // loop_footer
      %s16 = sadd.s32 1, %s12
    $region7: #{tpu_custom_call.1} parent=1 // loop_footer_branch
      %11 = sbr.rel target = $region3
    $region8: #{tpu_custom_call.1} parent=1 // loop_exit
      _
    %1604 = vsyncpa [#allocation3], 1
    %s1605 = scalar_lea.sflag [#allocation3], 1
    %1606 = vsyncpa %s1605, 1

</llo_original>
